<compile_context>
chip_gen: v7x
topology: tpu7x:2x2x1
jax: 0.10.0
libtpu: 0.0.40
codegen_flags: <defaults>
</compile_context>

<pallas_src>
import jax
import jax.numpy as jnp
from jax.experimental import pallas as pl
from jax.experimental.pallas import tpu as pltpu

EPS = 1e-5


# ----------------------------------------------------------------------------
# kernels
# ----------------------------------------------------------------------------
def _pad_im2col_conv(src, w_ref, pad_ref, col_ref):
    """3x3 / stride-1 / pad-1 conv of one image via a single im2col matmul.

    src:     (H, W, C) value, pad_ref.dtype
    w_ref:   (9*C, Cout) ref (flattened HWIO weights)
    pad_ref: (H+2, W+2, C) VMEM scratch
    col_ref: (H*W, 9*C)  VMEM scratch
    returns: (H*W, Cout) float32
    """
    H, W, C = src.shape

    # Zero only the 1-pixel halo border; the interior is fully overwritten.
    zrow = jnp.zeros((1, W + 2, C), pad_ref.dtype)
    zcol = jnp.zeros((H, 1, C), pad_ref.dtype)
    pad_ref[0:1, :, :] = zrow
    pad_ref[H + 1:H + 2, :, :] = zrow
    pad_ref[1:H + 1, 0:1, :] = zcol
    pad_ref[1:H + 1, W + 1:W + 2, :] = zcol
    pad_ref[1:H + 1, 1:W + 1, :] = src

    # im2col: 9 shifted windows -> (H*W, 9*C), then one MXU matmul (K = 9*C).
    for kh in range(3):
        for kw in range(3):
            t = kh * 3 + kw
            col_ref[:, t * C:(t + 1) * C] = (
                pad_ref[kh:kh + H, kw:kw + W, :].reshape(H * W, C))

    return jnp.dot(col_ref[...], w_ref[...],
                   preferred_element_type=jnp.float32)


def _conv_stats_kernel(x_ref, w_ref, y_ref, s_ref, ss_ref, pad_ref, col_ref):
    """conv3x3(x) for one image + per-image sum / sum-of-squares (for BN1)."""
    _, H, W, _ = x_ref.shape
    Cout = w_ref.shape[1]
    y = _pad_im2col_conv(x_ref[0], w_ref, pad_ref, col_ref)   # (H*W, Cout) f32
    y_ref[...] = y.reshape(1, H, W, Cout)
    s_ref[...] = jnp.sum(y, axis=0, keepdims=True).reshape(1, 1, Cout)
    ss_ref[...] = jnp.sum(y * y, axis=0, keepdims=True).reshape(1, 1, Cout)


def _bn_relu_conv_stats_kernel(y1_ref, scale_ref, shift_ref, w_ref,
                               y2_ref, s_ref, ss_ref, pad_ref, col_ref):
    """relu(bn1(y1)) -> conv3x3 for one image + per-image BN2 partial stats."""
    _, H, W, _ = y1_ref.shape
    Cout = w_ref.shape[1]
    # BN1 + ReLU in f32 (elementwise on the VPU stays f32 on all generations).
    h = jnp.maximum(y1_ref[0] * scale_ref[...] + shift_ref[...], 0.0)
    y = _pad_im2col_conv(h.astype(pad_ref.dtype), w_ref, pad_ref, col_ref)
    y2_ref[...] = y.reshape(1, H, W, Cout)
    s_ref[...] = jnp.sum(y, axis=0, keepdims=True).reshape(1, 1, Cout)
    ss_ref[...] = jnp.sum(y * y, axis=0, keepdims=True).reshape(1, 1, Cout)


def _bn_add_relu_kernel(y2_ref, scale_ref, shift_ref, res_ref, o_ref):
    """bn2(y2) + residual add + ReLU (all f32 elementwise)."""
    out = y2_ref[...] * scale_ref[...] + shift_ref[...] + res_ref[...]
    o_ref[...] = jnp.maximum(out, 0.0)


# ----------------------------------------------------------------------------
# wrappers
# ----------------------------------------------------------------------------
def _bn_scale_shift(s, ss, gamma, beta, count):
    """Finalize per-channel BN (scale, shift) from partial sums (f32)."""
    total = jnp.sum(s, axis=0).reshape(-1)        # (Cout,)
    total_sq = jnp.sum(ss, axis=0).reshape(-1)    # (Cout,)
    mean = total / count
    var = jnp.maximum(total_sq / count - mean * mean, 0.0)
    scale = gamma.astype(jnp.float32) * jax.lax.rsqrt(var + EPS)
    shift = beta.astype(jnp.float32) - mean * scale
    return scale.reshape(1, -1), shift.reshape(1, -1)


def basic_block_nhwc(x_nhwc, w1_hwio, g1, b1, w2_hwio, g2, b2,
                     *, mm_dtype=jnp.bfloat16):
    """BasicBlock forward.  NHWC activations / HWIO weights (hot-path API)."""
    B, H, W, C = x_nhwc.shape
    Cout = w1_hwio.shape[-1]
    assert w1_hwio.shape == (3, 3, C, Cout)
    assert w2_hwio.shape == (3, 3, Cout, Cout)
    assert C == Cout, "downsample=None requires in_chans == out_chans"

    x_f32 = x_nhwc.astype(jnp.float32)            # residual stays f32
    x_mm = x_nhwc.astype(mm_dtype)                # MXU operand
    w1_flat = w1_hwio.reshape(9 * C, Cout).astype(mm_dtype)
    w2_flat = w2_hwio.reshape(9 * Cout, Cout).astype(mm_dtype)

    parallel = pltpu.CompilerParams(dimension_semantics=("parallel",))

    def img_spec(c):
        return pl.BlockSpec((1, H, W, c), lambda b: (b, 0, 0, 0))

    def stat_spec(c):
        return pl.BlockSpec((1, 1, c), lambda b: (b, 0, 0))

    def full_spec(shape):
        return pl.BlockSpec(shape, lambda b: (0,) * len(shape))

    def conv_scratch(c):
        return [pltpu.VMEM((H + 2, W + 2, c), mm_dtype),
                pltpu.VMEM((H * W, 9 * c), mm_dtype)]

    img_shape = jax.ShapeDtypeStruct((B, H, W, Cout), jnp.float32)
    stat_shape = jax.ShapeDtypeStruct((B, 1, Cout), jnp.float32)
    count = float(B * H * W)

    # --- pass 1: conv1 + BN1 partial statistics ------------------------------
    y1, s1, ss1 = pl.pallas_call(
        _conv_stats_kernel,
        grid=(B,),
        in_specs=(img_spec(C), full_spec((9 * C, Cout))),
        out_specs=(img_spec(Cout), stat_spec(Cout), stat_spec(Cout)),
        out_shape=(img_shape, stat_shape, stat_shape),
        scratch_shapes=conv_scratch(C),
        compiler_params=parallel,
    )(x_mm, w1_flat)

    scale1, shift1 = _bn_scale_shift(s1, ss1, g1, b1, count)

    # --- pass 2: bn1 + relu + conv2 + BN2 partial statistics -----------------
    y2, s2, ss2 = pl.pallas_call(
        _bn_relu_conv_stats_kernel,
        grid=(B,),
        in_specs=(img_spec(Cout),
                  full_spec((1, Cout)), full_spec((1, Cout)),
                  full_spec((9 * Cout, Cout))),
        out_specs=(img_spec(Cout), stat_spec(Cout), stat_spec(Cout)),
        out_shape=(img_shape, stat_shape, stat_shape),
        scratch_shapes=conv_scratch(Cout),
        compiler_params=parallel,
    )(y1, scale1, shift1, w2_flat)

    scale2, shift2 = _bn_scale_shift(s2, ss2, g2, b2, count)

    # --- pass 3: bn2 + residual add + relu ------------------------------------
    out = pl.pallas_call(
        _bn_add_relu_kernel,
        grid=(B,),
        in_specs=(img_spec(Cout),
                  full_spec((1, Cout)), full_spec((1, Cout)),
                  img_spec(C)),
        out_specs=img_spec(Cout),
        out_shape=img_shape,
        compiler_params=parallel,
    )(y2, scale2, shift2, x_f32)

    return out


def basic_block(x_nchw, w1_oihw, g1, b1, w2_oihw, g2, b2,
                *, mm_dtype=jnp.bfloat16):
    """PyTorch-layout wrapper: NCHW activations, OIHW weights.

    If this block is called per layer inside a network, prefer
    basic_block_nhwc with NHWC/HWIO tensors so these transposes stay out of
    the hot path.
    """
    x_nhwc = jnp.transpose(x_nchw, (0, 2, 3, 1))
    w1 = jnp.transpose(w1_oihw, (2, 3, 1, 0))   # OIHW -> HWIO
    w2 = jnp.transpose(w2_oihw, (2, 3, 1, 0))
    out_nhwc = basic_block_nhwc(x_nhwc, w1, g1, b1, w2, g2, b2,
                                mm_dtype=mm_dtype)
    return jnp.transpose(out_nhwc, (0, 3, 1, 2))


# ----------------------------------------------------------------------------
# pure-JAX reference (mirrors the PyTorch forward, training-mode BN)
# ----------------------------------------------------------------------------
def reference_basic_block(x, w1, g1, b1, w2, g2, b2):
    def conv(x, w):
        return jax.lax.conv_general_dilated(
            x, w, window_strides=(1, 1), padding=[(1, 1), (1, 1)],
            dimension_numbers=('NCHW', 'OIHW', 'NCHW'))

    def bn(x, g, b):
        mean = x.mean(axis=(0, 2, 3), keepdims=True)
        var = ((x - mean) ** 2).mean(axis=(0, 2, 3), keepdims=True)
        return ((x - mean) * jax.lax.rsqrt(var + EPS)
                * g.reshape(1, -1, 1, 1) + b.reshape(1, -1, 1, 1))

    h = jnp.maximum(bn(conv(x, w1), g1, b1), 0.0)
    h = bn(conv(h, w2), g2, b2)
    return jnp.maximum(h + x, 0.0)


if __name__ == "__main__":
    key = jax.random.PRNGKey(0)
    k_x, k_w1, k_w2, k_g1, k_b1, k_g2, k_b2 = jax.random.split(key, 7)

    B, C, H, W = 2, 4, 16, 16  # in_chans == out_chans == 4
    x = jax.random.normal(k_x, (B, C, H, W), dtype=jnp.float32)
    w1 = 0.1 * jax.random.normal(k_w1, (C, C, 3, 3), dtype=jnp.float32)
    w2 = 0.1 * jax.random.normal(k_w2, (C, C, 3, 3), dtype=jnp.float32)
    g1 = 1.0 + 0.1 * jax.random.normal(k_g1, (C,), dtype=jnp.float32)
    b1 = 0.1 * jax.random.normal(k_b1, (C,), dtype=jnp.float32)
    g2 = 1.0 + 0.1 * jax.random.normal(k_g2, (C,), dtype=jnp.float32)
    b2 = 0.1 * jax.random.normal(k_b2, (C,), dtype=jnp.float32)

    ref = jax.block_until_ready(reference_basic_block(x, w1, g1, b1, w2, g2, b2))

    # Exact-math path (f32 MXU operands) — must match the reference tightly.
    out_f32 = jax.block_until_ready(
        basic_block(x, w1, g1, b1, w2, g2, b2, mm_dtype=jnp.float32))
    assert out_f32.shape == (B, C, H, W)
    err_f32 = float(jnp.max(jnp.abs(out_f32 - ref)))
    assert err_f32 < 5e-4, f"f32 path max abs diff {err_f32}"

    # Default perf path (bf16 MXU operands, f32 accumulation / BN math).
    out_bf16 = jax.block_until_ready(basic_block(x, w1, g1, b1, w2, g2, b2))
    assert out_bf16.shape == (B, C, H, W)
    err_bf16 = float(jnp.max(jnp.abs(out_bf16 - ref)))
    assert err_bf16 < 0.15, f"bf16 path max abs diff {err_bf16}"

    print("KERNEL_OK")
</pallas_src>

<mosaic_0001>
module attributes {stable_mosaic.version = 11 : i64} {
  func.func @_conv_stats_kernel(%arg0: i32, %arg1: memref<1x16x16x4xf32, #tpu.memory_space<vmem>>, %arg2: memref<36x4xf32, #tpu.memory_space<vmem>>, %arg3: memref<1x16x16x4xf32, #tpu.memory_space<vmem>>, %arg4: memref<1x1x4xf32, #tpu.memory_space<vmem>>, %arg5: memref<1x1x4xf32, #tpu.memory_space<vmem>>, %arg6: memref<18x18x4xf32, #tpu.memory_space<vmem>>, %arg7: memref<256x36xf32, #tpu.memory_space<vmem>>) attributes {dimension_semantics = [#tpu.dimension_semantics<parallel>], iteration_bounds = array<i64: 2>, scalar_prefetch = 0 : i64, scratch_operands = 2 : i64, tpu.core_type = #tpu.core_type<tc>, window_params = [{transform_indices = @transform_0, window_bounds = array<i64: 1, 16, 16, 4>}, {pipeline_mode = #tpu.pipeline_mode<synchronous>, transform_indices = @transform_1, window_bounds = array<i64: 36, 4>}, {transform_indices = @transform_2, window_bounds = array<i64: 1, 16, 16, 4>}, {transform_indices = @transform_3, window_bounds = array<i64: 1, 1, 4>}, {transform_indices = @transform_4, window_bounds = array<i64: 1, 1, 4>}]} {
    %c0 = arith.constant 0 : index
    %c0_0 = arith.constant 0 : index
    %c0_1 = arith.constant 0 : index
    %c0_2 = arith.constant 0 : index
    %0 = vector.load %arg1[%c0, %c0_0, %c0_1, %c0_2] : memref<1x16x16x4xf32, #tpu.memory_space<vmem>>, vector<1x16x16x4xf32>
    %1 = vector.shape_cast %0 : vector<1x16x16x4xf32> to vector<16x16x4xf32>
    %cst = arith.constant 0.000000e+00 : f32
    %2 = vector.broadcast %cst : f32 to vector<1x18x4xf32>
    %cst_3 = arith.constant 0.000000e+00 : f32
    %3 = vector.broadcast %cst_3 : f32 to vector<16x1x4xf32>
    %c0_4 = arith.constant 0 : index
    %c0_5 = arith.constant 0 : index
    %c0_6 = arith.constant 0 : index
    %4 = vector.load %arg6[%c0_4, %c0_5, %c0_6] : memref<18x18x4xf32, #tpu.memory_space<vmem>>, vector<1x18x4xf32>
    tpu.vector_store %arg6[%c0_4, %c0_5, %c0_6], %2 {strides = array<i32>} : memref<18x18x4xf32, #tpu.memory_space<vmem>>, vector<1x18x4xf32>,
    %c17 = arith.constant 17 : index
    %c0_7 = arith.constant 0 : index
    %c0_8 = arith.constant 0 : index
    %5 = vector.load %arg6[%c17, %c0_7, %c0_8] : memref<18x18x4xf32, #tpu.memory_space<vmem>>, vector<1x18x4xf32>
    tpu.vector_store %arg6[%c17, %c0_7, %c0_8], %2 {strides = array<i32>} : memref<18x18x4xf32, #tpu.memory_space<vmem>>, vector<1x18x4xf32>,
    %c1 = arith.constant 1 : index
    %c0_9 = arith.constant 0 : index
    %c0_10 = arith.constant 0 : index
    %6 = vector.load %arg6[%c1, %c0_9, %c0_10] : memref<18x18x4xf32, #tpu.memory_space<vmem>>, vector<16x1x4xf32>
    tpu.vector_store %arg6[%c1, %c0_9, %c0_10], %3 {strides = array<i32>} : memref<18x18x4xf32, #tpu.memory_space<vmem>>, vector<16x1x4xf32>,
    %c1_11 = arith.constant 1 : index
    %c17_12 = arith.constant 17 : index
    %c0_13 = arith.constant 0 : index
    %7 = vector.load %arg6[%c1_11, %c17_12, %c0_13] : memref<18x18x4xf32, #tpu.memory_space<vmem>>, vector<16x1x4xf32>
    tpu.vector_store %arg6[%c1_11, %c17_12, %c0_13], %3 {strides = array<i32>} : memref<18x18x4xf32, #tpu.memory_space<vmem>>, vector<16x1x4xf32>,
    %c1_14 = arith.constant 1 : index
    %c1_15 = arith.constant 1 : index
    %c0_16 = arith.constant 0 : index
    %8 = vector.load %arg6[%c1_14, %c1_15, %c0_16] : memref<18x18x4xf32, #tpu.memory_space<vmem>>, vector<16x16x4xf32>
    tpu.vector_store %arg6[%c1_14, %c1_15, %c0_16], %1 {strides = array<i32>} : memref<18x18x4xf32, #tpu.memory_space<vmem>>, vector<16x16x4xf32>,
    %c0_17 = arith.constant 0 : index
    %c0_18 = arith.constant 0 : index
    %c0_19 = arith.constant 0 : index
    %9 = vector.load %arg6[%c0_17, %c0_18, %c0_19] : memref<18x18x4xf32, #tpu.memory_space<vmem>>, vector<16x16x4xf32>
    %10 = vector.shape_cast %9 : vector<16x16x4xf32> to vector<256x4xf32>
    %c0_20 = arith.constant 0 : index
    %c0_21 = arith.constant 0 : index
    %11 = vector.load %arg7[%c0_20, %c0_21] : memref<256x36xf32, #tpu.memory_space<vmem>>, vector<256x4xf32>
    tpu.vector_store %arg7[%c0_20, %c0_21], %10 {strides = array<i32>} : memref<256x36xf32, #tpu.memory_space<vmem>>, vector<256x4xf32>,
    %c0_22 = arith.constant 0 : index
    %c1_23 = arith.constant 1 : index
    %c0_24 = arith.constant 0 : index
    %12 = vector.load %arg6[%c0_22, %c1_23, %c0_24] : memref<18x18x4xf32, #tpu.memory_space<vmem>>, vector<16x16x4xf32>
    %13 = vector.shape_cast %12 : vector<16x16x4xf32> to vector<256x4xf32>
    %c0_25 = arith.constant 0 : index
    %c4 = arith.constant 4 : index
    %14 = vector.load %arg7[%c0_25, %c4] : memref<256x36xf32, #tpu.memory_space<vmem>>, vector<256x4xf32>
    tpu.vector_store %arg7[%c0_25, %c4], %13 {strides = array<i32>} : memref<256x36xf32, #tpu.memory_space<vmem>>, vector<256x4xf32>,
    %c0_26 = arith.constant 0 : index
    %c2 = arith.constant 2 : index
    %c0_27 = arith.constant 0 : index
    %15 = vector.load %arg6[%c0_26, %c2, %c0_27] : memref<18x18x4xf32, #tpu.memory_space<vmem>>, vector<16x16x4xf32>
    %16 = vector.shape_cast %15 : vector<16x16x4xf32> to vector<256x4xf32>
    %c0_28 = arith.constant 0 : index
    %c8 = arith.constant 8 : index
    %17 = vector.load %arg7[%c0_28, %c8] : memref<256x36xf32, #tpu.memory_space<vmem>>, vector<256x4xf32>
    tpu.vector_store %arg7[%c0_28, %c8], %16 {strides = array<i32>} : memref<256x36xf32, #tpu.memory_space<vmem>>, vector<256x4xf32>,
    %c1_29 = arith.constant 1 : index
    %c0_30 = arith.constant 0 : index
    %c0_31 = arith.constant 0 : index
    %18 = vector.load %arg6[%c1_29, %c0_30, %c0_31] : memref<18x18x4xf32, #tpu.memory_space<vmem>>, vector<16x16x4xf32>
    %19 = vector.shape_cast %18 : vector<16x16x4xf32> to vector<256x4xf32>
    %c0_32 = arith.constant 0 : index
    %c12 = arith.constant 12 : index
    %20 = vector.load %arg7[%c0_32, %c12] : memref<256x36xf32, #tpu.memory_space<vmem>>, vector<256x4xf32>
    tpu.vector_store %arg7[%c0_32, %c12], %19 {strides = array<i32>} : memref<256x36xf32, #tpu.memory_space<vmem>>, vector<256x4xf32>,
    %c1_33 = arith.constant 1 : index
    %c1_34 = arith.constant 1 : index
    %c0_35 = arith.constant 0 : index
    %21 = vector.load %arg6[%c1_33, %c1_34, %c0_35] : memref<18x18x4xf32, #tpu.memory_space<vmem>>, vector<16x16x4xf32>
    %22 = vector.shape_cast %21 : vector<16x16x4xf32> to vector<256x4xf32>
    %c0_36 = arith.constant 0 : index
    %c16 = arith.constant 16 : index
    %23 = vector.load %arg7[%c0_36, %c16] : memref<256x36xf32, #tpu.memory_space<vmem>>, vector<256x4xf32>
    tpu.vector_store %arg7[%c0_36, %c16], %22 {strides = array<i32>} : memref<256x36xf32, #tpu.memory_space<vmem>>, vector<256x4xf32>,
    %c1_37 = arith.constant 1 : index
    %c2_38 = arith.constant 2 : index
    %c0_39 = arith.constant 0 : index
    %24 = vector.load %arg6[%c1_37, %c2_38, %c0_39] : memref<18x18x4xf32, #tpu.memory_space<vmem>>, vector<16x16x4xf32>
    %25 = vector.shape_cast %24 : vector<16x16x4xf32> to vector<256x4xf32>
    %c0_40 = arith.constant 0 : index
    %c20 = arith.constant 20 : index
    %26 = vector.load %arg7[%c0_40, %c20] : memref<256x36xf32, #tpu.memory_space<vmem>>, vector<256x4xf32>
    tpu.vector_store %arg7[%c0_40, %c20], %25 {strides = array<i32>} : memref<256x36xf32, #tpu.memory_space<vmem>>, vector<256x4xf32>,
    %c2_41 = arith.constant 2 : index
    %c0_42 = arith.constant 0 : index
    %c0_43 = arith.constant 0 : index
    %27 = vector.load %arg6[%c2_41, %c0_42, %c0_43] : memref<18x18x4xf32, #tpu.memory_space<vmem>>, vector<16x16x4xf32>
    %28 = vector.shape_cast %27 : vector<16x16x4xf32> to vector<256x4xf32>
    %c0_44 = arith.constant 0 : index
    %c24 = arith.constant 24 : index
    %29 = vector.load %arg7[%c0_44, %c24] : memref<256x36xf32, #tpu.memory_space<vmem>>, vector<256x4xf32>
    tpu.vector_store %arg7[%c0_44, %c24], %28 {strides = array<i32>} : memref<256x36xf32, #tpu.memory_space<vmem>>, vector<256x4xf32>,
    %c2_45 = arith.constant 2 : index
    %c1_46 = arith.constant 1 : index
    %c0_47 = arith.constant 0 : index
    %30 = vector.load %arg6[%c2_45, %c1_46, %c0_47] : memref<18x18x4xf32, #tpu.memory_space<vmem>>, vector<16x16x4xf32>
    %31 = vector.shape_cast %30 : vector<16x16x4xf32> to vector<256x4xf32>
    %c0_48 = arith.constant 0 : index
    %c28 = arith.constant 28 : index
    %32 = vector.load %arg7[%c0_48, %c28] : memref<256x36xf32, #tpu.memory_space<vmem>>, vector<256x4xf32>
    tpu.vector_store %arg7[%c0_48, %c28], %31 {strides = array<i32>} : memref<256x36xf32, #tpu.memory_space<vmem>>, vector<256x4xf32>,
    %c2_49 = arith.constant 2 : index
    %c2_50 = arith.constant 2 : index
    %c0_51 = arith.constant 0 : index
    %33 = vector.load %arg6[%c2_49, %c2_50, %c0_51] : memref<18x18x4xf32, #tpu.memory_space<vmem>>, vector<16x16x4xf32>
    %34 = vector.shape_cast %33 : vector<16x16x4xf32> to vector<256x4xf32>
    %c0_52 = arith.constant 0 : index
    %c32 = arith.constant 32 : index
    %35 = vector.load %arg7[%c0_52, %c32] : memref<256x36xf32, #tpu.memory_space<vmem>>, vector<256x4xf32>
    tpu.vector_store %arg7[%c0_52, %c32], %34 {strides = array<i32>} : memref<256x36xf32, #tpu.memory_space<vmem>>, vector<256x4xf32>,
    %c0_53 = arith.constant 0 : index
    %c0_54 = arith.constant 0 : index
    %36 = vector.load %arg7[%c0_53, %c0_54] : memref<256x36xf32, #tpu.memory_space<vmem>>, vector<256x36xf32>
    %c0_55 = arith.constant 0 : index
    %c0_56 = arith.constant 0 : index
    %37 = vector.load %arg2[%c0_55, %c0_56] : memref<36x4xf32, #tpu.memory_space<vmem>>, vector<36x4xf32>
    %cst_57 = arith.constant dense<0.000000e+00> : vector<256x4xf32>
    %38 = tpu.matmul %36, %37, %cst_57 {dimension_numbers = #tpu.dot_dimension_numbers<[1], [0], [0], [1], [0, 0, 1, 1], [], []>} : vector<256x36xf32>, vector<36x4xf32>, vector<256x4xf32> -> vector<256x4xf32>
    %39 = vector.shape_cast %38 : vector<256x4xf32> to vector<1x16x16x4xf32>
    %c0_58 = arith.constant 0 : index
    %c0_59 = arith.constant 0 : index
    %c0_60 = arith.constant 0 : index
    %c0_61 = arith.constant 0 : index
    %40 = vector.load %arg3[%c0_58, %c0_59, %c0_60, %c0_61] : memref<1x16x16x4xf32, #tpu.memory_space<vmem>>, vector<1x16x16x4xf32>
    tpu.vector_store %arg3[%c0_58, %c0_59, %c0_60, %c0_61], %39 {strides = array<i32>} : memref<1x16x16x4xf32, #tpu.memory_space<vmem>>, vector<1x16x16x4xf32>,
    %cst_62 = arith.constant dense<0.000000e+00> : vector<4xf32>
    %41 = vector.multi_reduction <add>, %38, %cst_62 [0] : vector<256x4xf32> to vector<4xf32>
    %42 = vector.shape_cast %41 : vector<4xf32> to vector<1x4xf32>
    %43 = vector.shape_cast %42 : vector<1x4xf32> to vector<1x1x4xf32>
    %c0_63 = arith.constant 0 : index
    %c0_64 = arith.constant 0 : index
    %c0_65 = arith.constant 0 : index
    %44 = vector.load %arg4[%c0_63, %c0_64, %c0_65] : memref<1x1x4xf32, #tpu.memory_space<vmem>>, vector<1x1x4xf32>
    tpu.vector_store %arg4[%c0_63, %c0_64, %c0_65], %43 {strides = array<i32>} : memref<1x1x4xf32, #tpu.memory_space<vmem>>, vector<1x1x4xf32>,
    %45 = arith.mulf %38, %38 : vector<256x4xf32>
    %cst_66 = arith.constant dense<0.000000e+00> : vector<4xf32>
    %46 = vector.multi_reduction <add>, %45, %cst_66 [0] : vector<256x4xf32> to vector<4xf32>
    %47 = vector.shape_cast %46 : vector<4xf32> to vector<1x4xf32>
    %48 = vector.shape_cast %47 : vector<1x4xf32> to vector<1x1x4xf32>
    %c0_67 = arith.constant 0 : index
    %c0_68 = arith.constant 0 : index
    %c0_69 = arith.constant 0 : index
    %49 = vector.load %arg5[%c0_67, %c0_68, %c0_69] : memref<1x1x4xf32, #tpu.memory_space<vmem>>, vector<1x1x4xf32>
    tpu.vector_store %arg5[%c0_67, %c0_68, %c0_69], %48 {strides = array<i32>} : memref<1x1x4xf32, #tpu.memory_space<vmem>>, vector<1x1x4xf32>,
    return
  }
  func.func @transform_0(%arg0: i32) -> (i32, i32, i32, i32) {
    %c0_i32 = arith.constant 0 : i32
    %c0_i32_0 = arith.constant 0 : i32
    %c0_i32_1 = arith.constant 0 : i32
    %c0_i32_2 = arith.constant 0 : i32
    return %arg0, %c0_i32, %c0_i32_0, %c0_i32_1 : i32, i32, i32, i32
  }
  func.func @transform_1(%arg0: i32) -> (i32, i32) {
    %c0_i32 = arith.constant 0 : i32
    %c0_i32_0 = arith.constant 0 : i32
    %c0_i32_1 = arith.constant 0 : i32
    return %c0_i32, %c0_i32_0 : i32, i32
  }
  func.func @transform_2(%arg0: i32) -> (i32, i32, i32, i32) {
    %c0_i32 = arith.constant 0 : i32
    %c0_i32_0 = arith.constant 0 : i32
    %c0_i32_1 = arith.constant 0 : i32
    %c0_i32_2 = arith.constant 0 : i32
    return %arg0, %c0_i32, %c0_i32_0, %c0_i32_1 : i32, i32, i32, i32
  }
  func.func @transform_3(%arg0: i32) -> (i32, i32, i32) {
    %c0_i32 = arith.constant 0 : i32
    %c0_i32_0 = arith.constant 0 : i32
    %c0_i32_1 = arith.constant 0 : i32
    return %arg0, %c0_i32, %c0_i32_0 : i32, i32, i32
  }
  func.func @transform_4(%arg0: i32) -> (i32, i32, i32) {
    %c0_i32 = arith.constant 0 : i32
    %c0_i32_0 = arith.constant 0 : i32
    %c0_i32_1 = arith.constant 0 : i32
    return %arg0, %c0_i32, %c0_i32_0 : i32, i32, i32
  }
}

</mosaic_0001>

<llo_original>
// kernel: tpu_custom_call.1
$region0: #{tpu_custom_call.1}
  #allocation0 [shape = 'u32[]', space=smem, size = 0x4, offset = 0x4, fixed_abs, tag = 'smem constant byte address 0x4 - core index']
  #allocation1 [shape = 'u32[144,128]{1,0:T(1,128)}', space=vmem, size = 0x12000, scoped, tag = 'internal scratch']
  #allocation2 [shape = 'f32[18,18,4]{2,1,0:T(8,128)}', space=vmem, size = 0x36000, scoped, tag = 'scratch operand']
  #allocation3 [shape = 'f32[256,36]{1,0:T(8,128)}', space=vmem, size = 0x20000, scoped, tag = 'scratch operand']
  %s0 = inlined_call_operand.vmem [shape: f32[2,16,16,4], index: 0, kind: input, shape index: {}]
  %s1 = inlined_call_operand.vmem [shape: f32[36,4], index: 1, kind: input, shape index: {}]
  %s2 = inlined_call_operand.vmem [shape: f32[2,16,16,4], index: 2, kind: output, shape index: {0}]
  %s3 = inlined_call_operand.hbm [shape: f32[2,1,4], index: 3, kind: output, shape index: {1}]
  %s4 = inlined_call_operand.hbm [shape: f32[2,1,4], index: 4, kind: output, shape index: {2}]
  %5 = xla_tuple %s2, %s3, %s4
  %s6 = sld [smem:[#allocation0]]
  $region57: #{tpu_custom_call.1} parent=0
    _
  %s8 = ssub.s32 1, %s6
  %s9 = scalar_select 0, %s8, %s6
  $region1: #{tpu_custom_call.1} parent=0
    #allocation4 [shape = 'u8[1024]{0}', space=vmem, size = 0x400, scoped, tag = 'output window, operand 1']
    #allocation5 [shape = 's32[2]{0}', space=sflag, size = 0x8, scoped, tag = 'scoped memory for tpu_custom_call.1']
    #allocation6 [shape = 'u8[1024]{0}', space=vmem, size = 0x400, scoped, tag = 'output window, operand 2']
    #allocation7 [shape = 's32[2]{0}', space=sflag, size = 0x8, scoped, tag = 'scoped memory for tpu_custom_call.1']
    %10 = vsyncpa [#allocation5], 0
    %s11 = scalar_lea.sflag [#allocation5], 1
    %12 = vsyncpa %s11, 0
    %13 = vsyncpa [#allocation7], 0
    %s14 = scalar_lea.sflag [#allocation7], 1
    %15 = vsyncpa %s14, 0
    loop: start=0, step=1, limit=4
    $region2: #{tpu_custom_call.1} parent=1 // loop_pre_header
      _
    $region3: #{tpu_custom_call.1} parent=1 // loop_header
      %s17 = sphi 0, %s21
      %p18 = scmp.ge.s32.totalorder %s17, 4
      %s27 = sphi 0, %s29
      %s30 = sphi 0, %s27
      %s31 = sphi 0, %s30
      %s47 = sphi 0, %s31
      %s51 = sphi 0, %s51
      %s53 = sphi 0, %s51
      %s54 = sphi 0, %s53
      %s68 = sphi 0, %s54
      %s74 = sphi 0, %s76
      %s77 = sphi 0, %s74
      %s78 = sphi 0, %s77
      %s94 = sphi 0, %s78
      %s100 = sphi 0, %s102
      %s103 = sphi 0, %s100
      %s104 = sphi 0, %s103
      %s120 = sphi 0, %s104
      %s126 = sphi 0, %s128
      %s129 = sphi 0, %s126
      %s130 = sphi 0, %s129
      %s146 = sphi 0, %s130
    $region4: #{tpu_custom_call.1} parent=1 // loop_header_branch
      %20 = sbr.rel (%p18) target = $region8
    $region5: #{tpu_custom_call.1} parent=1 // loop_body
      %s22 = ssub.s32 %s17, 1
      %s23 = ssub.s32 %s17, 2
      %s24 = sadd.s32 %s17, 1
      %s25 = ssub.s32 %s17, %s24
      %p26 = scmp.eq.s32.totalorder %s25, 0
      %s28 = sadd.s32 %s27, 1
      %s29 = scalar_select %p26, %s27, %s28
      %p32 = pneg %p26
      %p33 = scmp.eq.s32.totalorder %s17, 1
      %p34 = por %p32, %p33
      %p35 = scmp.ne.s32.totalorder %s27, %s30
      %p36 = scmp.eq.s32.totalorder %s17, 0
      %p37 = por %p35, %p36
      %p38 = scmp.ne.s32.totalorder %s27, %s30
      %p39 = scmp.eq.s32.totalorder %s22, 1
      %p40 = por %p38, %p39
      %p41 = scmp.ne.s32.totalorder %s30, %s31
      %p42 = scmp.eq.s32.totalorder %s22, 0
      %p43 = por %p41, %p42
      %p44 = scmp.ne.s32.totalorder %s30, %s31
      %p45 = scmp.eq.s32.totalorder %s23, 1
      %p46 = por %p44, %p45
      %p48 = scmp.ne.s32.totalorder %s31, %s47
      %p49 = scmp.eq.s32.totalorder %s23, 0
      %p50 = por %p48, %p49
      %s52 = sadd.s32 %s51, 1
      %p55 = scmp.eq.s32.totalorder %s17, 1
      %p56 = scmp.ne.s32.totalorder %s51, %s53
      %p57 = scmp.eq.s32.totalorder %s17, 0
      %p58 = por %p56, %p57
      %p59 = scmp.ne.s32.totalorder %s51, %s53
      %p60 = scmp.eq.s32.totalorder %s22, 1
      %p61 = por %p59, %p60
      %p62 = scmp.ne.s32.totalorder %s53, %s54
      %p63 = scmp.eq.s32.totalorder %s22, 0
      %p64 = por %p62, %p63
      %p65 = scmp.ne.s32.totalorder %s53, %s54
      %p66 = scmp.eq.s32.totalorder %s23, 1
      %p67 = por %p65, %p66
      %p69 = scmp.ne.s32.totalorder %s54, %s68
      %p70 = scmp.eq.s32.totalorder %s23, 0
      %p71 = por %p69, %p70
      %s72 = ssub.s32 %s17, %s24
      %p73 = scmp.eq.s32.totalorder %s72, 0
      %s75 = sadd.s32 %s74, 1
      %s76 = scalar_select %p73, %s74, %s75
      %p79 = pneg %p73
      %p80 = scmp.eq.s32.totalorder %s17, 1
      %p81 = por %p79, %p80
      %p82 = scmp.ne.s32.totalorder %s74, %s77
      %p83 = scmp.eq.s32.totalorder %s17, 0
      %p84 = por %p82, %p83
      %p85 = scmp.ne.s32.totalorder %s74, %s77
      %p86 = scmp.eq.s32.totalorder %s22, 1
      %p87 = por %p85, %p86
      %p88 = scmp.ne.s32.totalorder %s77, %s78
      %p89 = scmp.eq.s32.totalorder %s22, 0
      %p90 = por %p88, %p89
      %p91 = scmp.ne.s32.totalorder %s77, %s78
      %p92 = scmp.eq.s32.totalorder %s23, 1
      %p93 = por %p91, %p92
      %p95 = scmp.ne.s32.totalorder %s78, %s94
      %p96 = scmp.eq.s32.totalorder %s23, 0
      %p97 = por %p95, %p96
      %s98 = ssub.s32 %s17, %s24
      %p99 = scmp.eq.s32.totalorder %s98, 0
      %s101 = sadd.s32 %s100, 1
      %s102 = scalar_select %p99, %s100, %s101
      %p105 = pneg %p99
      %p106 = scmp.eq.s32.totalorder %s17, 1
      %p107 = por %p105, %p106
      %p108 = scmp.ne.s32.totalorder %s100, %s103
      %p109 = scmp.eq.s32.totalorder %s17, 0
      %p110 = por %p108, %p109
      %p111 = scmp.ne.s32.totalorder %s100, %s103
      %p112 = scmp.eq.s32.totalorder %s22, 1
      %p113 = por %p111, %p112
      %p114 = scmp.ne.s32.totalorder %s103, %s104
      %p115 = scmp.eq.s32.totalorder %s22, 0
      %p116 = por %p114, %p115
      %p117 = scmp.ne.s32.totalorder %s103, %s104
      %p118 = scmp.eq.s32.totalorder %s23, 1
      %p119 = por %p117, %p118
      %p121 = scmp.ne.s32.totalorder %s104, %s120
      %p122 = scmp.eq.s32.totalorder %s23, 0
      %p123 = por %p121, %p122
      %s124 = ssub.s32 %s17, %s24
      %p125 = scmp.eq.s32.totalorder %s124, 0
      %s127 = sadd.s32 %s126, 1
      %s128 = scalar_select %p125, %s126, %s127
      %p131 = pneg %p125
      %p132 = scmp.eq.s32.totalorder %s17, 1
      %p133 = por %p131, %p132
      %p134 = scmp.ne.s32.totalorder %s126, %s129
      %p135 = scmp.eq.s32.totalorder %s17, 0
      %p136 = por %p134, %p135
      %p137 = scmp.ne.s32.totalorder %s126, %s129
      %p138 = scmp.eq.s32.totalorder %s22, 1
      %p139 = por %p137, %p138
      %p140 = scmp.ne.s32.totalorder %s129, %s130
      %p141 = scmp.eq.s32.totalorder %s22, 0
      %p142 = por %p140, %p141
      %p143 = scmp.ne.s32.totalorder %s129, %s130
      %p144 = scmp.eq.s32.totalorder %s23, 1
      %p145 = por %p143, %p144
      %p147 = scmp.ne.s32.totalorder %s130, %s146
      %p148 = scmp.eq.s32.totalorder %s23, 0
      %p149 = por %p147, %p148
      %p150 = scmp.le.s32.totalorder 1, %s17
      %p151 = scmp.lt.s32.totalorder %s17, 3
      %p152 = pnand %p150, %p151
      %p153 = pneg %p152
      // Predicated region
      $region9: #{tpu_custom_call.1} parent=5 // pred_check
        _
      $region10: #{tpu_custom_call.1} parent=5 // pred_check_branch
        %155 = sbr.rel (%p152) target = $region12
      $region11: #{tpu_custom_call.1} parent=5 // pred_region
        %s156 = ssub.s32 %s17, 1
        // Predicated region
        $region13: #{tpu_custom_call.1} parent=11 // pred_check
          %p157 = pneg %p64
        $region14: #{tpu_custom_call.1} parent=11 // pred_check_branch
          %159 = sbr.rel (%p157) target = $region16
        $region15: #{tpu_custom_call.1} parent=11 // pred_region
          _
        $region16: #{tpu_custom_call.1} parent=11 // pred_fallthru
          _
      $region12: #{tpu_custom_call.1} parent=5 // pred_fallthru
        _
      %p160 = scmp.lt.s32.totalorder %s17, 2
      // Predicated region
      $region17: #{tpu_custom_call.1} parent=5 // pred_check
        %p161 = pneg %p160
      $region18: #{tpu_custom_call.1} parent=5 // pred_check_branch
        %163 = sbr.rel (%p161) target = $region20
      $region19: #{tpu_custom_call.1} parent=5 // pred_region
        // Predicated region
        $region21: #{tpu_custom_call.1} parent=19 // pred_check
          %p164 = pneg %p37
        $region22: #{tpu_custom_call.1} parent=19 // pred_check_branch
          %166 = sbr.rel (%p164) target = $region24
        $region23: #{tpu_custom_call.1} parent=19 // pred_region
          %p167 = scmp.lt.s32.totalorder %s17, 1
          %s168 = scalar_select %p167, %s17, 1
          %s169 = smul.addr %s168, 32
          %s170 = smul.addr %s169, 8
          %s171 = scalar_lea.vmem %s0, %s170
        $region24: #{tpu_custom_call.1} parent=19 // pred_fallthru
          _
      $region20: #{tpu_custom_call.1} parent=5 // pred_fallthru
        _
      %p172 = scmp.le.s32.totalorder 1, %s17
      %p173 = scmp.lt.s32.totalorder %s17, 3
      %p174 = pnand %p172, %p173
      %p175 = pneg %p174
      // Predicated region
      $region25: #{tpu_custom_call.1} parent=5 // pred_check
        _
      $region26: #{tpu_custom_call.1} parent=5 // pred_check_branch
        %177 = sbr.rel (%p174) target = $region28
      $region27: #{tpu_custom_call.1} parent=5 // pred_region
        %s178 = ssub.s32 %s17, 1
        %p179 = scmp.lt.s32.totalorder %s22, 1
        %s180 = scalar_select %p179, %s22, 1
        %s181 = smul.addr %s180, 32
        %s182 = smul.addr %s181, 8
        %s183 = scalar_lea.vmem %s0, %s182
        %p184 = pneg %p43
        %p185 = pneg %p40
        %p186 = pneg %p64
        %p187 = pneg %p61
        %p188 = pneg %p90
        %p189 = pneg %p87
        %p190 = scmp.lt.s32.totalorder %s22, 1
        %s191 = scalar_select %p190, %s22, 1
        %s192 = smul.addr %s191, 32
        %s193 = smul.addr %s192, 8
        %s194 = scalar_lea.vmem %s2, %s193
        %p195 = pneg %p116
        %p196 = pneg %p113
        %s197 = sand.u32 %s103, 1
        %s198 = scalar_lea.sflag [#allocation5], %s197
        %s199 = sand.u32 %s103, 1
        %s200 = scalar_lea.vmem [#allocation4], %s199
        %p201 = pneg %p142
        %p202 = pneg %p139
        %s203 = sand.u32 %s129, 1
        %s204 = scalar_lea.sflag [#allocation7], %s203
        %s205 = sand.u32 %s129, 1
        %s206 = scalar_lea.vmem [#allocation6], %s205
        %p207 = scmp.lt.s32.totalorder %s22, 1
        %s208 = scalar_select %p207, %s22, 1
        %s209 = smul.addr %s208, 32
        %s210 = smul.addr %s209, 8
        %s211 = scalar_lea.vmem %s0, %s210
        %p212 = scmp.lt.s32.totalorder %s22, 1
        %s213 = scalar_select %p212, %s22, 1
        %s214 = smul.addr %s213, 32
        %s215 = smul.addr %s214, 8
        %s216 = scalar_lea.vmem %s2, %s215
        %v217 = vld [vmem:[%s211] sm:$0xff]
        %v218 = vld [vmem:[%s211 + $0x8] sm:$0xff]
        %v219 = vld [vmem:[%s211 + $0x10] sm:$0xff]
        %v220 = vld [vmem:[%s211 + $0x18] sm:$0xff]
        %v221 = vld [vmem:[%s211 + $0x20] sm:$0xff]
        %v222 = vld [vmem:[%s211 + $0x28] sm:$0xff]
        %v223 = vld [vmem:[%s211 + $0x30] sm:$0xff]
        %v224 = vld [vmem:[%s211 + $0x38] sm:$0xff]
        %v225 = vld [vmem:[%s211 + $0x40] sm:$0xff]
        %v226 = vld [vmem:[%s211 + $0x48] sm:$0xff]
        %v227 = vld [vmem:[%s211 + $0x50] sm:$0xff]
        %v228 = vld [vmem:[%s211 + $0x58] sm:$0xff]
        %v229 = vld [vmem:[%s211 + $0x60] sm:$0xff]
        %v230 = vld [vmem:[%s211 + $0x68] sm:$0xff]
        %v231 = vld [vmem:[%s211 + $0x70] sm:$0xff]
        %v232 = vld [vmem:[%s211 + $0x78] sm:$0xff]
        %v233 = vld [vmem:[%s211 + $0x80] sm:$0xff]
        %v234 = vld [vmem:[%s211 + $0x88] sm:$0xff]
        %v235 = vld [vmem:[%s211 + $0x90] sm:$0xff]
        %v236 = vld [vmem:[%s211 + $0x98] sm:$0xff]
        %v237 = vld [vmem:[%s211 + $0xa0] sm:$0xff]
        %v238 = vld [vmem:[%s211 + $0xa8] sm:$0xff]
        %v239 = vld [vmem:[%s211 + $0xb0] sm:$0xff]
        %v240 = vld [vmem:[%s211 + $0xb8] sm:$0xff]
        %v241 = vld [vmem:[%s211 + $0xc0] sm:$0xff]
        %v242 = vld [vmem:[%s211 + $0xc8] sm:$0xff]
        %v243 = vld [vmem:[%s211 + $0xd0] sm:$0xff]
        %v244 = vld [vmem:[%s211 + $0xd8] sm:$0xff]
        %v245 = vld [vmem:[%s211 + $0xe0] sm:$0xff]
        %v246 = vld [vmem:[%s211 + $0xe8] sm:$0xff]
        %v247 = vld [vmem:[%s211 + $0xf0] sm:$0xff]
        %v248 = vld [vmem:[%s211 + $0xf8] sm:$0xff]
        %vm249 = vcmask 31744
        %250 = vst.msk [vmem:[#allocation2] sm:$0xff] %vm249, 0.0
        %251 = vst.msk [vmem:[#allocation2 + $0x8] sm:$0xff] %vm249, 0.0
        %vm252 = vcmask 25600
        %253 = vst.msk [vmem:[#allocation2 + $0x10] sm:$0x3] %vm252, 0.0
        %s254 = scalar_lea.vmem [#allocation2], 408
        %255 = vst.msk [vmem:[%s254] sm:$0xff] %vm249, 0.0
        %256 = vst.msk [vmem:[%s254 + $0x8] sm:$0xff] %vm249, 0.0
        %257 = vst.msk [vmem:[%s254 + $0x10] sm:$0x3] %vm252, 0.0
        %s258 = scalar_lea.vmem [#allocation2], 24
        %vm259 = vcmask 24576
        %260 = vst.msk [vmem:[%s258] sm:$0x1] %vm259, 0.0
        %261 = vst.msk [vmem:[%s258 + $0x18] sm:$0x1] %vm259, 0.0
        %262 = vst.msk [vmem:[%s258 + $0x30] sm:$0x1] %vm259, 0.0
        %263 = vst.msk [vmem:[%s258 + $0x48] sm:$0x1] %vm259, 0.0
        %264 = vst.msk [vmem:[%s258 + $0x60] sm:$0x1] %vm259, 0.0
        %265 = vst.msk [vmem:[%s258 + $0x78] sm:$0x1] %vm259, 0.0
        %266 = vst.msk [vmem:[%s258 + $0x90] sm:$0x1] %vm259, 0.0
        %267 = vst.msk [vmem:[%s258 + $0xa8] sm:$0x1] %vm259, 0.0
        %268 = vst.msk [vmem:[%s258 + $0xc0] sm:$0x1] %vm259, 0.0
        %269 = vst.msk [vmem:[%s258 + $0xd8] sm:$0x1] %vm259, 0.0
        %270 = vst.msk [vmem:[%s258 + $0xf0] sm:$0x1] %vm259, 0.0
        %271 = vst.msk [vmem:[%s258 + $0x108] sm:$0x1] %vm259, 0.0
        %272 = vst.msk [vmem:[%s258 + $0x120] sm:$0x1] %vm259, 0.0
        %273 = vst.msk [vmem:[%s258 + $0x138] sm:$0x1] %vm259, 0.0
        %274 = vst.msk [vmem:[%s258 + $0x150] sm:$0x1] %vm259, 0.0
        %275 = vst.msk [vmem:[%s258 + $0x168] sm:$0x1] %vm259, 0.0
        %276 = vst.msk [vmem:[%s258 + $0x11] sm:$0x1] %vm259, 0.0
        %277 = vst.msk [vmem:[%s258 + $0x29] sm:$0x1] %vm259, 0.0
        %278 = vst.msk [vmem:[%s258 + $0x41] sm:$0x1] %vm259, 0.0
        %279 = vst.msk [vmem:[%s258 + $0x59] sm:$0x1] %vm259, 0.0
        %280 = vst.msk [vmem:[%s258 + $0x71] sm:$0x1] %vm259, 0.0
        %281 = vst.msk [vmem:[%s258 + $0x89] sm:$0x1] %vm259, 0.0
        %282 = vst.msk [vmem:[%s258 + $0xa1] sm:$0x1] %vm259, 0.0
        %283 = vst.msk [vmem:[%s258 + $0xb9] sm:$0x1] %vm259, 0.0
        %284 = vst.msk [vmem:[%s258 + $0xd1] sm:$0x1] %vm259, 0.0
        %285 = vst.msk [vmem:[%s258 + $0xe9] sm:$0x1] %vm259, 0.0
        %286 = vst.msk [vmem:[%s258 + $0x101] sm:$0x1] %vm259, 0.0
        %287 = vst.msk [vmem:[%s258 + $0x119] sm:$0x1] %vm259, 0.0
        %288 = vst.msk [vmem:[%s258 + $0x131] sm:$0x1] %vm259, 0.0
        %289 = vst.msk [vmem:[%s258 + $0x149] sm:$0x1] %vm259, 0.0
        %290 = vst.msk [vmem:[%s258 + $0x161] sm:$0x1] %vm259, 0.0
        %291 = vst.msk [vmem:[%s258 + $0x179] sm:$0x1] %vm259, 0.0
        %292 = vst.msk [vmem:[%s258 + $0x1] sm:$0xff] %vm249, %v217
        %293 = vst.msk [vmem:[%s258 + $0x9] sm:$0xff] %vm249, %v218
        %294 = vst.msk [vmem:[%s258 + $0x19] sm:$0xff] %vm249, %v219
        %295 = vst.msk [vmem:[%s258 + $0x21] sm:$0xff] %vm249, %v220
        %296 = vst.msk [vmem:[%s258 + $0x31] sm:$0xff] %vm249, %v221
        %297 = vst.msk [vmem:[%s258 + $0x39] sm:$0xff] %vm249, %v222
        %298 = vst.msk [vmem:[%s258 + $0x49] sm:$0xff] %vm249, %v223
        %299 = vst.msk [vmem:[%s258 + $0x51] sm:$0xff] %vm249, %v224
        %300 = vst.msk [vmem:[%s258 + $0x61] sm:$0xff] %vm249, %v225
        %301 = vst.msk [vmem:[%s258 + $0x69] sm:$0xff] %vm249, %v226
        %302 = vst.msk [vmem:[%s258 + $0x79] sm:$0xff] %vm249, %v227
        %303 = vst.msk [vmem:[%s258 + $0x81] sm:$0xff] %vm249, %v228
        %304 = vst.msk [vmem:[%s258 + $0x91] sm:$0xff] %vm249, %v229
        %305 = vst.msk [vmem:[%s258 + $0x99] sm:$0xff] %vm249, %v230
        %306 = vst.msk [vmem:[%s258 + $0xa9] sm:$0xff] %vm249, %v231
        %307 = vst.msk [vmem:[%s258 + $0xb1] sm:$0xff] %vm249, %v232
        %308 = vst.msk [vmem:[%s258 + $0xc1] sm:$0xff] %vm249, %v233
        %309 = vst.msk [vmem:[%s258 + $0xc9] sm:$0xff] %vm249, %v234
        %310 = vst.msk [vmem:[%s258 + $0xd9] sm:$0xff] %vm249, %v235
        %311 = vst.msk [vmem:[%s258 + $0xe1] sm:$0xff] %vm249, %v236
        %312 = vst.msk [vmem:[%s258 + $0xf1] sm:$0xff] %vm249, %v237
        %313 = vst.msk [vmem:[%s258 + $0xf9] sm:$0xff] %vm249, %v238
        %314 = vst.msk [vmem:[%s258 + $0x109] sm:$0xff] %vm249, %v239
        %315 = vst.msk [vmem:[%s258 + $0x111] sm:$0xff] %vm249, %v240
        %316 = vst.msk [vmem:[%s258 + $0x121] sm:$0xff] %vm249, %v241
        %317 = vst.msk [vmem:[%s258 + $0x129] sm:$0xff] %vm249, %v242
        %318 = vst.msk [vmem:[%s258 + $0x139] sm:$0xff] %vm249, %v243
        %319 = vst.msk [vmem:[%s258 + $0x141] sm:$0xff] %vm249, %v244
        %320 = vst.msk [vmem:[%s258 + $0x151] sm:$0xff] %vm249, %v245
        %321 = vst.msk [vmem:[%s258 + $0x159] sm:$0xff] %vm249, %v246
        %322 = vst.msk [vmem:[%s258 + $0x169] sm:$0xff] %vm249, %v247
        %323 = vst.msk [vmem:[%s258 + $0x171] sm:$0xff] %vm249, %v248
        %v324 = vld [vmem:[#allocation2] sm:$0xff]
        %v325 = vld [vmem:[#allocation2 + $0x8] sm:$0xff]
        %v326 = vld [vmem:[#allocation2 + $0x18] sm:$0xff]
        %v327 = vld [vmem:[#allocation2 + $0x20] sm:$0xff]
        %v328 = vld [vmem:[#allocation2 + $0x30] sm:$0xff]
        %v329 = vld [vmem:[#allocation2 + $0x38] sm:$0xff]
        %v330 = vld [vmem:[#allocation2 + $0x48] sm:$0xff]
        %v331 = vld [vmem:[#allocation2 + $0x50] sm:$0xff]
        %v332 = vld [vmem:[#allocation2 + $0x60] sm:$0xff]
        %v333 = vld [vmem:[#allocation2 + $0x68] sm:$0xff]
        %v334 = vld [vmem:[#allocation2 + $0x78] sm:$0xff]
        %v335 = vld [vmem:[#allocation2 + $0x80] sm:$0xff]
        %v336 = vld [vmem:[#allocation2 + $0x90] sm:$0xff]
        %v337 = vld [vmem:[#allocation2 + $0x98] sm:$0xff]
        %v338 = vld [vmem:[#allocation2 + $0xa8] sm:$0xff]
        %v339 = vld [vmem:[#allocation2 + $0xb0] sm:$0xff]
        %v340 = vld [vmem:[#allocation2 + $0xc0] sm:$0xff]
        %v341 = vld [vmem:[#allocation2 + $0xc8] sm:$0xff]
        %v342 = vld [vmem:[#allocation2 + $0xd8] sm:$0xff]
        %v343 = vld [vmem:[#allocation2 + $0xe0] sm:$0xff]
        %v344 = vld [vmem:[#allocation2 + $0xf0] sm:$0xff]
        %v345 = vld [vmem:[#allocation2 + $0xf8] sm:$0xff]
        %v346 = vld [vmem:[#allocation2 + $0x108] sm:$0xff]
        %v347 = vld [vmem:[#allocation2 + $0x110] sm:$0xff]
        %v348 = vld [vmem:[#allocation2 + $0x120] sm:$0xff]
        %v349 = vld [vmem:[#allocation2 + $0x128] sm:$0xff]
        %v350 = vld [vmem:[#allocation2 + $0x138] sm:$0xff]
        %v351 = vld [vmem:[#allocation2 + $0x140] sm:$0xff]
        %v352 = vld [vmem:[#allocation2 + $0x150] sm:$0xff]
        %v353 = vld [vmem:[#allocation2 + $0x158] sm:$0xff]
        %v354 = vld [vmem:[#allocation2 + $0x168] sm:$0xff]
        %v355 = vld [vmem:[#allocation2 + $0x170] sm:$0xff]
        %356 = vst.msk [vmem:[#allocation3] sm:$0xff] %vm249, %v324
        %357 = vst.msk [vmem:[#allocation3 + $0x8] sm:$0xff] %vm249, %v325
        %358 = vst.msk [vmem:[#allocation3 + $0x10] sm:$0xff] %vm249, %v326
        %359 = vst.msk [vmem:[#allocation3 + $0x18] sm:$0xff] %vm249, %v327
        %360 = vst.msk [vmem:[#allocation3 + $0x20] sm:$0xff] %vm249, %v328
        %361 = vst.msk [vmem:[#allocation3 + $0x28] sm:$0xff] %vm249, %v329
        %362 = vst.msk [vmem:[#allocation3 + $0x30] sm:$0xff] %vm249, %v330
        %363 = vst.msk [vmem:[#allocation3 + $0x38] sm:$0xff] %vm249, %v331
        %364 = vst.msk [vmem:[#allocation3 + $0x40] sm:$0xff] %vm249, %v332
        %365 = vst.msk [vmem:[#allocation3 + $0x48] sm:$0xff] %vm249, %v333
        %366 = vst.msk [vmem:[#allocation3 + $0x50] sm:$0xff] %vm249, %v334
        %367 = vst.msk [vmem:[#allocation3 + $0x58] sm:$0xff] %vm249, %v335
        %368 = vst.msk [vmem:[#allocation3 + $0x60] sm:$0xff] %vm249, %v336
        %369 = vst.msk [vmem:[#allocation3 + $0x68] sm:$0xff] %vm249, %v337
        %370 = vst.msk [vmem:[#allocation3 + $0x70] sm:$0xff] %vm249, %v338
        %371 = vst.msk [vmem:[#allocation3 + $0x78] sm:$0xff] %vm249, %v339
        %372 = vst.msk [vmem:[#allocation3 + $0x80] sm:$0xff] %vm249, %v340
        %373 = vst.msk [vmem:[#allocation3 + $0x88] sm:$0xff] %vm249, %v341
        %374 = vst.msk [vmem:[#allocation3 + $0x90] sm:$0xff] %vm249, %v342
        %375 = vst.msk [vmem:[#allocation3 + $0x98] sm:$0xff] %vm249, %v343
        %376 = vst.msk [vmem:[#allocation3 + $0xa0] sm:$0xff] %vm249, %v344
        %377 = vst.msk [vmem:[#allocation3 + $0xa8] sm:$0xff] %vm249, %v345
        %378 = vst.msk [vmem:[#allocation3 + $0xb0] sm:$0xff] %vm249, %v346
        %379 = vst.msk [vmem:[#allocation3 + $0xb8] sm:$0xff] %vm249, %v347
        %380 = vst.msk [vmem:[#allocation3 + $0xc0] sm:$0xff] %vm249, %v348
        %381 = vst.msk [vmem:[#allocation3 + $0xc8] sm:$0xff] %vm249, %v349
        %382 = vst.msk [vmem:[#allocation3 + $0xd0] sm:$0xff] %vm249, %v350
        %383 = vst.msk [vmem:[#allocation3 + $0xd8] sm:$0xff] %vm249, %v351
        %384 = vst.msk [vmem:[#allocation3 + $0xe0] sm:$0xff] %vm249, %v352
        %385 = vst.msk [vmem:[#allocation3 + $0xe8] sm:$0xff] %vm249, %v353
        %386 = vst.msk [vmem:[#allocation3 + $0xf0] sm:$0xff] %vm249, %v354
        %387 = vst.msk [vmem:[#allocation3 + $0xf8] sm:$0xff] %vm249, %v355
        %v388 = vld [vmem:[#allocation2 + $0x1] sm:$0xff]
        %v389 = vld [vmem:[#allocation2 + $0x9] sm:$0xff]
        %v390 = vld [vmem:[#allocation2 + $0x19] sm:$0xff]
        %v391 = vld [vmem:[#allocation2 + $0x21] sm:$0xff]
        %v392 = vld [vmem:[#allocation2 + $0x31] sm:$0xff]
        %v393 = vld [vmem:[#allocation2 + $0x39] sm:$0xff]
        %v394 = vld [vmem:[#allocation2 + $0x49] sm:$0xff]
        %v395 = vld [vmem:[#allocation2 + $0x51] sm:$0xff]
        %v396 = vld [vmem:[#allocation2 + $0x61] sm:$0xff]
        %v397 = vld [vmem:[#allocation2 + $0x69] sm:$0xff]
        %v398 = vld [vmem:[#allocation2 + $0x79] sm:$0xff]
        %v399 = vld [vmem:[#allocation2 + $0x81] sm:$0xff]
        %v400 = vld [vmem:[#allocation2 + $0x91] sm:$0xff]
        %v401 = vld [vmem:[#allocation2 + $0x99] sm:$0xff]
        %v402 = vld [vmem:[#allocation2 + $0xa9] sm:$0xff]
        %v403 = vld [vmem:[#allocation2 + $0xb1] sm:$0xff]
        %v404 = vld [vmem:[#allocation2 + $0xc1] sm:$0xff]
        %v405 = vld [vmem:[#allocation2 + $0xc9] sm:$0xff]
        %v406 = vld [vmem:[#allocation2 + $0xd9] sm:$0xff]
        %v407 = vld [vmem:[#allocation2 + $0xe1] sm:$0xff]
        %v408 = vld [vmem:[#allocation2 + $0xf1] sm:$0xff]
        %v409 = vld [vmem:[#allocation2 + $0xf9] sm:$0xff]
        %v410 = vld [vmem:[#allocation2 + $0x109] sm:$0xff]
        %v411 = vld [vmem:[#allocation2 + $0x111] sm:$0xff]
        %v412 = vld [vmem:[#allocation2 + $0x121] sm:$0xff]
        %v413 = vld [vmem:[#allocation2 + $0x129] sm:$0xff]
        %v414 = vld [vmem:[#allocation2 + $0x139] sm:$0xff]
        %v415 = vld [vmem:[#allocation2 + $0x141] sm:$0xff]
        %v416 = vld [vmem:[#allocation2 + $0x151] sm:$0xff]
        %v417 = vld [vmem:[#allocation2 + $0x159] sm:$0xff]
        %v418 = vld [vmem:[#allocation2 + $0x169] sm:$0xff]
        %v419 = vld [vmem:[#allocation2 + $0x171] sm:$0xff]
        %452 = vrot.lane.b32.xlu0 %v388, 4
        %v453 = vpop.permute.xlu0 %452
        %454 = vrot.lane.b32.xlu0 %v389, 4
        %v455 = vpop.permute.xlu0 %454
        %456 = vrot.lane.b32.xlu0 %v390, 4
        %v457 = vpop.permute.xlu0 %456
        %458 = vrot.lane.b32.xlu0 %v391, 4
        %v459 = vpop.permute.xlu0 %458
        %460 = vrot.lane.b32.xlu0 %v392, 4
        %v461 = vpop.permute.xlu0 %460
        %462 = vrot.lane.b32.xlu0 %v393, 4
        %v463 = vpop.permute.xlu0 %462
        %464 = vrot.lane.b32.xlu0 %v394, 4
        %v465 = vpop.permute.xlu0 %464
        %466 = vrot.lane.b32.xlu0 %v395, 4
        %v467 = vpop.permute.xlu0 %466
        %468 = vrot.lane.b32.xlu0 %v396, 4
        %v469 = vpop.permute.xlu0 %468
        %470 = vrot.lane.b32.xlu0 %v397, 4
        %v471 = vpop.permute.xlu0 %470
        %472 = vrot.lane.b32.xlu0 %v398, 4
        %v473 = vpop.permute.xlu0 %472
        %474 = vrot.lane.b32.xlu0 %v399, 4
        %v475 = vpop.permute.xlu0 %474
        %476 = vrot.lane.b32.xlu0 %v400, 4
        %v477 = vpop.permute.xlu0 %476
        %478 = vrot.lane.b32.xlu0 %v401, 4
        %v479 = vpop.permute.xlu0 %478
        %480 = vrot.lane.b32.xlu0 %v402, 4
        %v481 = vpop.permute.xlu0 %480
        %482 = vrot.lane.b32.xlu0 %v403, 4
        %v483 = vpop.permute.xlu0 %482
        %484 = vrot.lane.b32.xlu0 %v404, 4
        %v485 = vpop.permute.xlu0 %484
        %486 = vrot.lane.b32.xlu0 %v405, 4
        %v487 = vpop.permute.xlu0 %486
        %488 = vrot.lane.b32.xlu0 %v406, 4
        %v489 = vpop.permute.xlu0 %488
        %490 = vrot.lane.b32.xlu0 %v407, 4
        %v491 = vpop.permute.xlu0 %490
        %492 = vrot.lane.b32.xlu0 %v408, 4
        %v493 = vpop.permute.xlu0 %492
        %494 = vrot.lane.b32.xlu0 %v409, 4
        %v495 = vpop.permute.xlu0 %494
        %496 = vrot.lane.b32.xlu0 %v410, 4
        %v497 = vpop.permute.xlu0 %496
        %498 = vrot.lane.b32.xlu0 %v411, 4
        %v499 = vpop.permute.xlu0 %498
        %500 = vrot.lane.b32.xlu0 %v412, 4
        %v501 = vpop.permute.xlu0 %500
        %502 = vrot.lane.b32.xlu0 %v413, 4
        %v503 = vpop.permute.xlu0 %502
        %504 = vrot.lane.b32.xlu0 %v414, 4
        %v505 = vpop.permute.xlu0 %504
        %506 = vrot.lane.b32.xlu0 %v415, 4
        %v507 = vpop.permute.xlu0 %506
        %508 = vrot.lane.b32.xlu0 %v416, 4
        %v509 = vpop.permute.xlu0 %508
        %510 = vrot.lane.b32.xlu0 %v417, 4
        %v511 = vpop.permute.xlu0 %510
        %512 = vrot.lane.b32.xlu0 %v418, 4
        %v513 = vpop.permute.xlu0 %512
        %514 = vrot.lane.b32.xlu0 %v419, 4
        %v515 = vpop.permute.xlu0 %514
        %vm548 = vcmask 64544
        %549 = vst.msk [vmem:[#allocation3] sm:$0xff] %vm548, %v453
        %550 = vst.msk [vmem:[#allocation3 + $0x8] sm:$0xff] %vm548, %v455
        %551 = vst.msk [vmem:[#allocation3 + $0x10] sm:$0xff] %vm548, %v457
        %552 = vst.msk [vmem:[#allocation3 + $0x18] sm:$0xff] %vm548, %v459
        %553 = vst.msk [vmem:[#allocation3 + $0x20] sm:$0xff] %vm548, %v461
        %554 = vst.msk [vmem:[#allocation3 + $0x28] sm:$0xff] %vm548, %v463
        %555 = vst.msk [vmem:[#allocation3 + $0x30] sm:$0xff] %vm548, %v465
        %556 = vst.msk [vmem:[#allocation3 + $0x38] sm:$0xff] %vm548, %v467
        %557 = vst.msk [vmem:[#allocation3 + $0x40] sm:$0xff] %vm548, %v469
        %558 = vst.msk [vmem:[#allocation3 + $0x48] sm:$0xff] %vm548, %v471
        %559 = vst.msk [vmem:[#allocation3 + $0x50] sm:$0xff] %vm548, %v473
        %560 = vst.msk [vmem:[#allocation3 + $0x58] sm:$0xff] %vm548, %v475
        %561 = vst.msk [vmem:[#allocation3 + $0x60] sm:$0xff] %vm548, %v477
        %562 = vst.msk [vmem:[#allocation3 + $0x68] sm:$0xff] %vm548, %v479
        %563 = vst.msk [vmem:[#allocation3 + $0x70] sm:$0xff] %vm548, %v481
        %564 = vst.msk [vmem:[#allocation3 + $0x78] sm:$0xff] %vm548, %v483
        %565 = vst.msk [vmem:[#allocation3 + $0x80] sm:$0xff] %vm548, %v485
        %566 = vst.msk [vmem:[#allocation3 + $0x88] sm:$0xff] %vm548, %v487
        %567 = vst.msk [vmem:[#allocation3 + $0x90] sm:$0xff] %vm548, %v489
        %568 = vst.msk [vmem:[#allocation3 + $0x98] sm:$0xff] %vm548, %v491
        %569 = vst.msk [vmem:[#allocation3 + $0xa0] sm:$0xff] %vm548, %v493
        %570 = vst.msk [vmem:[#allocation3 + $0xa8] sm:$0xff] %vm548, %v495
        %571 = vst.msk [vmem:[#allocation3 + $0xb0] sm:$0xff] %vm548, %v497
        %572 = vst.msk [vmem:[#allocation3 + $0xb8] sm:$0xff] %vm548, %v499
        %573 = vst.msk [vmem:[#allocation3 + $0xc0] sm:$0xff] %vm548, %v501
        %574 = vst.msk [vmem:[#allocation3 + $0xc8] sm:$0xff] %vm548, %v503
        %575 = vst.msk [vmem:[#allocation3 + $0xd0] sm:$0xff] %vm548, %v505
        %576 = vst.msk [vmem:[#allocation3 + $0xd8] sm:$0xff] %vm548, %v507
        %577 = vst.msk [vmem:[#allocation3 + $0xe0] sm:$0xff] %vm548, %v509
        %578 = vst.msk [vmem:[#allocation3 + $0xe8] sm:$0xff] %vm548, %v511
        %579 = vst.msk [vmem:[#allocation3 + $0xf0] sm:$0xff] %vm548, %v513
        %580 = vst.msk [vmem:[#allocation3 + $0xf8] sm:$0xff] %vm548, %v515
        %v581 = vld [vmem:[#allocation2 + $0x2] sm:$0xff]
        %v582 = vld [vmem:[#allocation2 + $0xa] sm:$0xff]
        %v583 = vld [vmem:[#allocation2 + $0x1a] sm:$0xff]
        %v584 = vld [vmem:[#allocation2 + $0x22] sm:$0xff]
        %v585 = vld [vmem:[#allocation2 + $0x32] sm:$0xff]
        %v586 = vld [vmem:[#allocation2 + $0x3a] sm:$0xff]
        %v587 = vld [vmem:[#allocation2 + $0x4a] sm:$0xff]
        %v588 = vld [vmem:[#allocation2 + $0x52] sm:$0xff]
        %v589 = vld [vmem:[#allocation2 + $0x62] sm:$0xff]
        %v590 = vld [vmem:[#allocation2 + $0x6a] sm:$0xff]
        %v591 = vld [vmem:[#allocation2 + $0x7a] sm:$0xff]
        %v592 = vld [vmem:[#allocation2 + $0x82] sm:$0xff]
        %v593 = vld [vmem:[#allocation2 + $0x92] sm:$0xff]
        %v594 = vld [vmem:[#allocation2 + $0x9a] sm:$0xff]
        %v595 = vld [vmem:[#allocation2 + $0xaa] sm:$0xff]
        %v596 = vld [vmem:[#allocation2 + $0xb2] sm:$0xff]
        %v597 = vld [vmem:[#allocation2 + $0xc2] sm:$0xff]
        %v598 = vld [vmem:[#allocation2 + $0xca] sm:$0xff]
        %v599 = vld [vmem:[#allocation2 + $0xda] sm:$0xff]
        %v600 = vld [vmem:[#allocation2 + $0xe2] sm:$0xff]
        %v601 = vld [vmem:[#allocation2 + $0xf2] sm:$0xff]
        %v602 = vld [vmem:[#allocation2 + $0xfa] sm:$0xff]
        %v603 = vld [vmem:[#allocation2 + $0x10a] sm:$0xff]
        %v604 = vld [vmem:[#allocation2 + $0x112] sm:$0xff]
        %v605 = vld [vmem:[#allocation2 + $0x122] sm:$0xff]
        %v606 = vld [vmem:[#allocation2 + $0x12a] sm:$0xff]
        %v607 = vld [vmem:[#allocation2 + $0x13a] sm:$0xff]
        %v608 = vld [vmem:[#allocation2 + $0x142] sm:$0xff]
        %v609 = vld [vmem:[#allocation2 + $0x152] sm:$0xff]
        %v610 = vld [vmem:[#allocation2 + $0x15a] sm:$0xff]
        %v611 = vld [vmem:[#allocation2 + $0x16a] sm:$0xff]
        %v612 = vld [vmem:[#allocation2 + $0x172] sm:$0xff]
        %645 = vrot.lane.b32.xlu0 %v581, 8
        %v646 = vpop.permute.xlu0 %645
        %647 = vrot.lane.b32.xlu0 %v582, 8
        %v648 = vpop.permute.xlu0 %647
        %649 = vrot.lane.b32.xlu0 %v583, 8
        %v650 = vpop.permute.xlu0 %649
        %651 = vrot.lane.b32.xlu0 %v584, 8
        %v652 = vpop.permute.xlu0 %651
        %653 = vrot.lane.b32.xlu0 %v585, 8
        %v654 = vpop.permute.xlu0 %653
        %655 = vrot.lane.b32.xlu0 %v586, 8
        %v656 = vpop.permute.xlu0 %655
        %657 = vrot.lane.b32.xlu0 %v587, 8
        %v658 = vpop.permute.xlu0 %657
        %659 = vrot.lane.b32.xlu0 %v588, 8
        %v660 = vpop.permute.xlu0 %659
        %661 = vrot.lane.b32.xlu0 %v589, 8
        %v662 = vpop.permute.xlu0 %661
        %663 = vrot.lane.b32.xlu0 %v590, 8
        %v664 = vpop.permute.xlu0 %663
        %665 = vrot.lane.b32.xlu0 %v591, 8
        %v666 = vpop.permute.xlu0 %665
        %667 = vrot.lane.b32.xlu0 %v592, 8
        %v668 = vpop.permute.xlu0 %667
        %669 = vrot.lane.b32.xlu0 %v593, 8
        %v670 = vpop.permute.xlu0 %669
        %671 = vrot.lane.b32.xlu0 %v594, 8
        %v672 = vpop.permute.xlu0 %671
        %673 = vrot.lane.b32.xlu0 %v595, 8
        %v674 = vpop.permute.xlu0 %673
        %675 = vrot.lane.b32.xlu0 %v596, 8
        %v676 = vpop.permute.xlu0 %675
        %677 = vrot.lane.b32.xlu0 %v597, 8
        %v678 = vpop.permute.xlu0 %677
        %679 = vrot.lane.b32.xlu0 %v598, 8
        %v680 = vpop.permute.xlu0 %679
        %681 = vrot.lane.b32.xlu0 %v599, 8
        %v682 = vpop.permute.xlu0 %681
        %683 = vrot.lane.b32.xlu0 %v600, 8
        %v684 = vpop.permute.xlu0 %683
        %685 = vrot.lane.b32.xlu0 %v601, 8
        %v686 = vpop.permute.xlu0 %685
        %687 = vrot.lane.b32.xlu0 %v602, 8
        %v688 = vpop.permute.xlu0 %687
        %689 = vrot.lane.b32.xlu0 %v603, 8
        %v690 = vpop.permute.xlu0 %689
        %691 = vrot.lane.b32.xlu0 %v604, 8
        %v692 = vpop.permute.xlu0 %691
        %693 = vrot.lane.b32.xlu0 %v605, 8
        %v694 = vpop.permute.xlu0 %693
        %695 = vrot.lane.b32.xlu0 %v606, 8
        %v696 = vpop.permute.xlu0 %695
        %697 = vrot.lane.b32.xlu0 %v607, 8
        %v698 = vpop.permute.xlu0 %697
        %699 = vrot.lane.b32.xlu0 %v608, 8
        %v700 = vpop.permute.xlu0 %699
        %701 = vrot.lane.b32.xlu0 %v609, 8
        %v702 = vpop.permute.xlu0 %701
        %703 = vrot.lane.b32.xlu0 %v610, 8
        %v704 = vpop.permute.xlu0 %703
        %705 = vrot.lane.b32.xlu0 %v611, 8
        %v706 = vpop.permute.xlu0 %705
        %707 = vrot.lane.b32.xlu0 %v612, 8
        %v708 = vpop.permute.xlu0 %707
        %vm741 = vcmask 97344
        %742 = vst.msk [vmem:[#allocation3] sm:$0xff] %vm741, %v646
        %743 = vst.msk [vmem:[#allocation3 + $0x8] sm:$0xff] %vm741, %v648
        %744 = vst.msk [vmem:[#allocation3 + $0x10] sm:$0xff] %vm741, %v650
        %745 = vst.msk [vmem:[#allocation3 + $0x18] sm:$0xff] %vm741, %v652
        %746 = vst.msk [vmem:[#allocation3 + $0x20] sm:$0xff] %vm741, %v654
        %747 = vst.msk [vmem:[#allocation3 + $0x28] sm:$0xff] %vm741, %v656
        %748 = vst.msk [vmem:[#allocation3 + $0x30] sm:$0xff] %vm741, %v658
        %749 = vst.msk [vmem:[#allocation3 + $0x38] sm:$0xff] %vm741, %v660
        %750 = vst.msk [vmem:[#allocation3 + $0x40] sm:$0xff] %vm741, %v662
        %751 = vst.msk [vmem:[#allocation3 + $0x48] sm:$0xff] %vm741, %v664
        %752 = vst.msk [vmem:[#allocation3 + $0x50] sm:$0xff] %vm741, %v666
        %753 = vst.msk [vmem:[#allocation3 + $0x58] sm:$0xff] %vm741, %v668
        %754 = vst.msk [vmem:[#allocation3 + $0x60] sm:$0xff] %vm741, %v670
        %755 = vst.msk [vmem:[#allocation3 + $0x68] sm:$0xff] %vm741, %v672
        %756 = vst.msk [vmem:[#allocation3 + $0x70] sm:$0xff] %vm741, %v674
        %757 = vst.msk [vmem:[#allocation3 + $0x78] sm:$0xff] %vm741, %v676
        %758 = vst.msk [vmem:[#allocation3 + $0x80] sm:$0xff] %vm741, %v678
        %759 = vst.msk [vmem:[#allocation3 + $0x88] sm:$0xff] %vm741, %v680
        %760 = vst.msk [vmem:[#allocation3 + $0x90] sm:$0xff] %vm741, %v682
        %761 = vst.msk [vmem:[#allocation3 + $0x98] sm:$0xff] %vm741, %v684
        %762 = vst.msk [vmem:[#allocation3 + $0xa0] sm:$0xff] %vm741, %v686
        %763 = vst.msk [vmem:[#allocation3 + $0xa8] sm:$0xff] %vm741, %v688
        %764 = vst.msk [vmem:[#allocation3 + $0xb0] sm:$0xff] %vm741, %v690
        %765 = vst.msk [vmem:[#allocation3 + $0xb8] sm:$0xff] %vm741, %v692
        %766 = vst.msk [vmem:[#allocation3 + $0xc0] sm:$0xff] %vm741, %v694
        %767 = vst.msk [vmem:[#allocation3 + $0xc8] sm:$0xff] %vm741, %v696
        %768 = vst.msk [vmem:[#allocation3 + $0xd0] sm:$0xff] %vm741, %v698
        %769 = vst.msk [vmem:[#allocation3 + $0xd8] sm:$0xff] %vm741, %v700
        %770 = vst.msk [vmem:[#allocation3 + $0xe0] sm:$0xff] %vm741, %v702
        %771 = vst.msk [vmem:[#allocation3 + $0xe8] sm:$0xff] %vm741, %v704
        %772 = vst.msk [vmem:[#allocation3 + $0xf0] sm:$0xff] %vm741, %v706
        %773 = vst.msk [vmem:[#allocation3 + $0xf8] sm:$0xff] %vm741, %v708
        %v774 = vld [vmem:[%s258] sm:$0xff]
        %v775 = vld [vmem:[%s258 + $0x8] sm:$0xff]
        %v776 = vld [vmem:[%s258 + $0x18] sm:$0xff]
        %v777 = vld [vmem:[%s258 + $0x20] sm:$0xff]
        %v778 = vld [vmem:[%s258 + $0x30] sm:$0xff]
        %v779 = vld [vmem:[%s258 + $0x38] sm:$0xff]
        %v780 = vld [vmem:[%s258 + $0x48] sm:$0xff]
        %v781 = vld [vmem:[%s258 + $0x50] sm:$0xff]
        %v782 = vld [vmem:[%s258 + $0x60] sm:$0xff]
        %v783 = vld [vmem:[%s258 + $0x68] sm:$0xff]
        %v784 = vld [vmem:[%s258 + $0x78] sm:$0xff]
        %v785 = vld [vmem:[%s258 + $0x80] sm:$0xff]
        %v786 = vld [vmem:[%s258 + $0x90] sm:$0xff]
        %v787 = vld [vmem:[%s258 + $0x98] sm:$0xff]
        %v788 = vld [vmem:[%s258 + $0xa8] sm:$0xff]
        %v789 = vld [vmem:[%s258 + $0xb0] sm:$0xff]
        %v790 = vld [vmem:[%s258 + $0xc0] sm:$0xff]
        %v791 = vld [vmem:[%s258 + $0xc8] sm:$0xff]
        %v792 = vld [vmem:[%s258 + $0xd8] sm:$0xff]
        %v793 = vld [vmem:[%s258 + $0xe0] sm:$0xff]
        %v794 = vld [vmem:[%s258 + $0xf0] sm:$0xff]
        %v795 = vld [vmem:[%s258 + $0xf8] sm:$0xff]
        %v796 = vld [vmem:[%s258 + $0x108] sm:$0xff]
        %v797 = vld [vmem:[%s258 + $0x110] sm:$0xff]
        %v798 = vld [vmem:[%s258 + $0x120] sm:$0xff]
        %v799 = vld [vmem:[%s258 + $0x128] sm:$0xff]
        %v800 = vld [vmem:[%s258 + $0x138] sm:$0xff]
        %v801 = vld [vmem:[%s258 + $0x140] sm:$0xff]
        %v802 = vld [vmem:[%s258 + $0x150] sm:$0xff]
        %v803 = vld [vmem:[%s258 + $0x158] sm:$0xff]
        %v804 = vld [vmem:[%s258 + $0x168] sm:$0xff]
        %v805 = vld [vmem:[%s258 + $0x170] sm:$0xff]
        %838 = vrot.lane.b32.xlu0 %v774, 12
        %v839 = vpop.permute.xlu0 %838
        %840 = vrot.lane.b32.xlu0 %v775, 12
        %v841 = vpop.permute.xlu0 %840
        %842 = vrot.lane.b32.xlu0 %v776, 12
        %v843 = vpop.permute.xlu0 %842
        %844 = vrot.lane.b32.xlu0 %v777, 12
        %v845 = vpop.permute.xlu0 %844
        %846 = vrot.lane.b32.xlu0 %v778, 12
        %v847 = vpop.permute.xlu0 %846
        %848 = vrot.lane.b32.xlu0 %v779, 12
        %v849 = vpop.permute.xlu0 %848
        %850 = vrot.lane.b32.xlu0 %v780, 12
        %v851 = vpop.permute.xlu0 %850
        %852 = vrot.lane.b32.xlu0 %v781, 12
        %v853 = vpop.permute.xlu0 %852
        %854 = vrot.lane.b32.xlu0 %v782, 12
        %v855 = vpop.permute.xlu0 %854
        %856 = vrot.lane.b32.xlu0 %v783, 12
        %v857 = vpop.permute.xlu0 %856
        %858 = vrot.lane.b32.xlu0 %v784, 12
        %v859 = vpop.permute.xlu0 %858
        %860 = vrot.lane.b32.xlu0 %v785, 12
        %v861 = vpop.permute.xlu0 %860
        %862 = vrot.lane.b32.xlu0 %v786, 12
        %v863 = vpop.permute.xlu0 %862
        %864 = vrot.lane.b32.xlu0 %v787, 12
        %v865 = vpop.permute.xlu0 %864
        %866 = vrot.lane.b32.xlu0 %v788, 12
        %v867 = vpop.permute.xlu0 %866
        %868 = vrot.lane.b32.xlu0 %v789, 12
        %v869 = vpop.permute.xlu0 %868
        %870 = vrot.lane.b32.xlu0 %v790, 12
        %v871 = vpop.permute.xlu0 %870
        %872 = vrot.lane.b32.xlu0 %v791, 12
        %v873 = vpop.permute.xlu0 %872
        %874 = vrot.lane.b32.xlu0 %v792, 12
        %v875 = vpop.permute.xlu0 %874
        %876 = vrot.lane.b32.xlu0 %v793, 12
        %v877 = vpop.permute.xlu0 %876
        %878 = vrot.lane.b32.xlu0 %v794, 12
        %v879 = vpop.permute.xlu0 %878
        %880 = vrot.lane.b32.xlu0 %v795, 12
        %v881 = vpop.permute.xlu0 %880
        %882 = vrot.lane.b32.xlu0 %v796, 12
        %v883 = vpop.permute.xlu0 %882
        %884 = vrot.lane.b32.xlu0 %v797, 12
        %v885 = vpop.permute.xlu0 %884
        %886 = vrot.lane.b32.xlu0 %v798, 12
        %v887 = vpop.permute.xlu0 %886
        %888 = vrot.lane.b32.xlu0 %v799, 12
        %v889 = vpop.permute.xlu0 %888
        %890 = vrot.lane.b32.xlu0 %v800, 12
        %v891 = vpop.permute.xlu0 %890
        %892 = vrot.lane.b32.xlu0 %v801, 12
        %v893 = vpop.permute.xlu0 %892
        %894 = vrot.lane.b32.xlu0 %v802, 12
        %v895 = vpop.permute.xlu0 %894
        %896 = vrot.lane.b32.xlu0 %v803, 12
        %v897 = vpop.permute.xlu0 %896
        %898 = vrot.lane.b32.xlu0 %v804, 12
        %v899 = vpop.permute.xlu0 %898
        %900 = vrot.lane.b32.xlu0 %v805, 12
        %v901 = vpop.permute.xlu0 %900
        %vm934 = vcmask 130144
        %935 = vst.msk [vmem:[#allocation3] sm:$0xff] %vm934, %v839
        %936 = vst.msk [vmem:[#allocation3 + $0x8] sm:$0xff] %vm934, %v841
        %937 = vst.msk [vmem:[#allocation3 + $0x10] sm:$0xff] %vm934, %v843
        %938 = vst.msk [vmem:[#allocation3 + $0x18] sm:$0xff] %vm934, %v845
        %939 = vst.msk [vmem:[#allocation3 + $0x20] sm:$0xff] %vm934, %v847
        %940 = vst.msk [vmem:[#allocation3 + $0x28] sm:$0xff] %vm934, %v849
        %941 = vst.msk [vmem:[#allocation3 + $0x30] sm:$0xff] %vm934, %v851
        %942 = vst.msk [vmem:[#allocation3 + $0x38] sm:$0xff] %vm934, %v853
        %943 = vst.msk [vmem:[#allocation3 + $0x40] sm:$0xff] %vm934, %v855
        %944 = vst.msk [vmem:[#allocation3 + $0x48] sm:$0xff] %vm934, %v857
        %945 = vst.msk [vmem:[#allocation3 + $0x50] sm:$0xff] %vm934, %v859
        %946 = vst.msk [vmem:[#allocation3 + $0x58] sm:$0xff] %vm934, %v861
        %947 = vst.msk [vmem:[#allocation3 + $0x60] sm:$0xff] %vm934, %v863
        %948 = vst.msk [vmem:[#allocation3 + $0x68] sm:$0xff] %vm934, %v865
        %949 = vst.msk [vmem:[#allocation3 + $0x70] sm:$0xff] %vm934, %v867
        %950 = vst.msk [vmem:[#allocation3 + $0x78] sm:$0xff] %vm934, %v869
        %951 = vst.msk [vmem:[#allocation3 + $0x80] sm:$0xff] %vm934, %v871
        %952 = vst.msk [vmem:[#allocation3 + $0x88] sm:$0xff] %vm934, %v873
        %953 = vst.msk [vmem:[#allocation3 + $0x90] sm:$0xff] %vm934, %v875
        %954 = vst.msk [vmem:[#allocation3 + $0x98] sm:$0xff] %vm934, %v877
        %955 = vst.msk [vmem:[#allocation3 + $0xa0] sm:$0xff] %vm934, %v879
        %956 = vst.msk [vmem:[#allocation3 + $0xa8] sm:$0xff] %vm934, %v881
        %957 = vst.msk [vmem:[#allocation3 + $0xb0] sm:$0xff] %vm934, %v883
        %958 = vst.msk [vmem:[#allocation3 + $0xb8] sm:$0xff] %vm934, %v885
        %959 = vst.msk [vmem:[#allocation3 + $0xc0] sm:$0xff] %vm934, %v887
        %960 = vst.msk [vmem:[#allocation3 + $0xc8] sm:$0xff] %vm934, %v889
        %961 = vst.msk [vmem:[#allocation3 + $0xd0] sm:$0xff] %vm934, %v891
        %962 = vst.msk [vmem:[#allocation3 + $0xd8] sm:$0xff] %vm934, %v893
        %963 = vst.msk [vmem:[#allocation3 + $0xe0] sm:$0xff] %vm934, %v895
        %964 = vst.msk [vmem:[#allocation3 + $0xe8] sm:$0xff] %vm934, %v897
        %965 = vst.msk [vmem:[#allocation3 + $0xf0] sm:$0xff] %vm934, %v899
        %966 = vst.msk [vmem:[#allocation3 + $0xf8] sm:$0xff] %vm934, %v901
        %v967 = vld [vmem:[%s258 + $0x1] sm:$0xff]
        %v968 = vld [vmem:[%s258 + $0x9] sm:$0xff]
        %v969 = vld [vmem:[%s258 + $0x19] sm:$0xff]
        %v970 = vld [vmem:[%s258 + $0x21] sm:$0xff]
        %v971 = vld [vmem:[%s258 + $0x31] sm:$0xff]
        %v972 = vld [vmem:[%s258 + $0x39] sm:$0xff]
        %v973 = vld [vmem:[%s258 + $0x49] sm:$0xff]
        %v974 = vld [vmem:[%s258 + $0x51] sm:$0xff]
        %v975 = vld [vmem:[%s258 + $0x61] sm:$0xff]
        %v976 = vld [vmem:[%s258 + $0x69] sm:$0xff]
        %v977 = vld [vmem:[%s258 + $0x79] sm:$0xff]
        %v978 = vld [vmem:[%s258 + $0x81] sm:$0xff]
        %v979 = vld [vmem:[%s258 + $0x91] sm:$0xff]
        %v980 = vld [vmem:[%s258 + $0x99] sm:$0xff]
        %v981 = vld [vmem:[%s258 + $0xa9] sm:$0xff]
        %v982 = vld [vmem:[%s258 + $0xb1] sm:$0xff]
        %v983 = vld [vmem:[%s258 + $0xc1] sm:$0xff]
        %v984 = vld [vmem:[%s258 + $0xc9] sm:$0xff]
        %v985 = vld [vmem:[%s258 + $0xd9] sm:$0xff]
        %v986 = vld [vmem:[%s258 + $0xe1] sm:$0xff]
        %v987 = vld [vmem:[%s258 + $0xf1] sm:$0xff]
        %v988 = vld [vmem:[%s258 + $0xf9] sm:$0xff]
        %v989 = vld [vmem:[%s258 + $0x109] sm:$0xff]
        %v990 = vld [vmem:[%s258 + $0x111] sm:$0xff]
        %v991 = vld [vmem:[%s258 + $0x121] sm:$0xff]
        %v992 = vld [vmem:[%s258 + $0x129] sm:$0xff]
        %v993 = vld [vmem:[%s258 + $0x139] sm:$0xff]
        %v994 = vld [vmem:[%s258 + $0x141] sm:$0xff]
        %v995 = vld [vmem:[%s258 + $0x151] sm:$0xff]
        %v996 = vld [vmem:[%s258 + $0x159] sm:$0xff]
        %v997 = vld [vmem:[%s258 + $0x169] sm:$0xff]
        %v998 = vld [vmem:[%s258 + $0x171] sm:$0xff]
        %1031 = vrot.lane.b32.xlu0 %v967, 16
        %v1032 = vpop.permute.xlu0 %1031
        %1033 = vrot.lane.b32.xlu0 %v968, 16
        %v1034 = vpop.permute.xlu0 %1033
        %1035 = vrot.lane.b32.xlu0 %v969, 16
        %v1036 = vpop.permute.xlu0 %1035
        %1037 = vrot.lane.b32.xlu0 %v970, 16
        %v1038 = vpop.permute.xlu0 %1037
        %1039 = vrot.lane.b32.xlu0 %v971, 16
        %v1040 = vpop.permute.xlu0 %1039
        %1041 = vrot.lane.b32.xlu0 %v972, 16
        %v1042 = vpop.permute.xlu0 %1041
        %1043 = vrot.lane.b32.xlu0 %v973, 16
        %v1044 = vpop.permute.xlu0 %1043
        %1045 = vrot.lane.b32.xlu0 %v974, 16
        %v1046 = vpop.permute.xlu0 %1045
        %1047 = vrot.lane.b32.xlu0 %v975, 16
        %v1048 = vpop.permute.xlu0 %1047
        %1049 = vrot.lane.b32.xlu0 %v976, 16
        %v1050 = vpop.permute.xlu0 %1049
        %1051 = vrot.lane.b32.xlu0 %v977, 16
        %v1052 = vpop.permute.xlu0 %1051
        %1053 = vrot.lane.b32.xlu0 %v978, 16
        %v1054 = vpop.permute.xlu0 %1053
        %1055 = vrot.lane.b32.xlu0 %v979, 16
        %v1056 = vpop.permute.xlu0 %1055
        %1057 = vrot.lane.b32.xlu0 %v980, 16
        %v1058 = vpop.permute.xlu0 %1057
        %1059 = vrot.lane.b32.xlu0 %v981, 16
        %v1060 = vpop.permute.xlu0 %1059
        %1061 = vrot.lane.b32.xlu0 %v982, 16
        %v1062 = vpop.permute.xlu0 %1061
        %1063 = vrot.lane.b32.xlu0 %v983, 16
        %v1064 = vpop.permute.xlu0 %1063
        %1065 = vrot.lane.b32.xlu0 %v984, 16
        %v1066 = vpop.permute.xlu0 %1065
        %1067 = vrot.lane.b32.xlu0 %v985, 16
        %v1068 = vpop.permute.xlu0 %1067
        %1069 = vrot.lane.b32.xlu0 %v986, 16
        %v1070 = vpop.permute.xlu0 %1069
        %1071 = vrot.lane.b32.xlu0 %v987, 16
        %v1072 = vpop.permute.xlu0 %1071
        %1073 = vrot.lane.b32.xlu0 %v988, 16
        %v1074 = vpop.permute.xlu0 %1073
        %1075 = vrot.lane.b32.xlu0 %v989, 16
        %v1076 = vpop.permute.xlu0 %1075
        %1077 = vrot.lane.b32.xlu0 %v990, 16
        %v1078 = vpop.permute.xlu0 %1077
        %1079 = vrot.lane.b32.xlu0 %v991, 16
        %v1080 = vpop.permute.xlu0 %1079
        %1081 = vrot.lane.b32.xlu0 %v992, 16
        %v1082 = vpop.permute.xlu0 %1081
        %1083 = vrot.lane.b32.xlu0 %v993, 16
        %v1084 = vpop.permute.xlu0 %1083
        %1085 = vrot.lane.b32.xlu0 %v994, 16
        %v1086 = vpop.permute.xlu0 %1085
        %1087 = vrot.lane.b32.xlu0 %v995, 16
        %v1088 = vpop.permute.xlu0 %1087
        %1089 = vrot.lane.b32.xlu0 %v996, 16
        %v1090 = vpop.permute.xlu0 %1089
        %1091 = vrot.lane.b32.xlu0 %v997, 16
        %v1092 = vpop.permute.xlu0 %1091
        %1093 = vrot.lane.b32.xlu0 %v998, 16
        %v1094 = vpop.permute.xlu0 %1093
        %vm1127 = vcmask 162944
        %1128 = vst.msk [vmem:[#allocation3] sm:$0xff] %vm1127, %v1032
        %1129 = vst.msk [vmem:[#allocation3 + $0x8] sm:$0xff] %vm1127, %v1034
        %1130 = vst.msk [vmem:[#allocation3 + $0x10] sm:$0xff] %vm1127, %v1036
        %1131 = vst.msk [vmem:[#allocation3 + $0x18] sm:$0xff] %vm1127, %v1038
        %1132 = vst.msk [vmem:[#allocation3 + $0x20] sm:$0xff] %vm1127, %v1040
        %1133 = vst.msk [vmem:[#allocation3 + $0x28] sm:$0xff] %vm1127, %v1042
        %1134 = vst.msk [vmem:[#allocation3 + $0x30] sm:$0xff] %vm1127, %v1044
        %1135 = vst.msk [vmem:[#allocation3 + $0x38] sm:$0xff] %vm1127, %v1046
        %1136 = vst.msk [vmem:[#allocation3 + $0x40] sm:$0xff] %vm1127, %v1048
        %1137 = vst.msk [vmem:[#allocation3 + $0x48] sm:$0xff] %vm1127, %v1050
        %1138 = vst.msk [vmem:[#allocation3 + $0x50] sm:$0xff] %vm1127, %v1052
        %1139 = vst.msk [vmem:[#allocation3 + $0x58] sm:$0xff] %vm1127, %v1054
        %1140 = vst.msk [vmem:[#allocation3 + $0x60] sm:$0xff] %vm1127, %v1056
        %1141 = vst.msk [vmem:[#allocation3 + $0x68] sm:$0xff] %vm1127, %v1058
        %1142 = vst.msk [vmem:[#allocation3 + $0x70] sm:$0xff] %vm1127, %v1060
        %1143 = vst.msk [vmem:[#allocation3 + $0x78] sm:$0xff] %vm1127, %v1062
        %1144 = vst.msk [vmem:[#allocation3 + $0x80] sm:$0xff] %vm1127, %v1064
        %1145 = vst.msk [vmem:[#allocation3 + $0x88] sm:$0xff] %vm1127, %v1066
        %1146 = vst.msk [vmem:[#allocation3 + $0x90] sm:$0xff] %vm1127, %v1068
        %1147 = vst.msk [vmem:[#allocation3 + $0x98] sm:$0xff] %vm1127, %v1070
        %1148 = vst.msk [vmem:[#allocation3 + $0xa0] sm:$0xff] %vm1127, %v1072
        %1149 = vst.msk [vmem:[#allocation3 + $0xa8] sm:$0xff] %vm1127, %v1074
        %1150 = vst.msk [vmem:[#allocation3 + $0xb0] sm:$0xff] %vm1127, %v1076
        %1151 = vst.msk [vmem:[#allocation3 + $0xb8] sm:$0xff] %vm1127, %v1078
        %1152 = vst.msk [vmem:[#allocation3 + $0xc0] sm:$0xff] %vm1127, %v1080
        %1153 = vst.msk [vmem:[#allocation3 + $0xc8] sm:$0xff] %vm1127, %v1082
        %1154 = vst.msk [vmem:[#allocation3 + $0xd0] sm:$0xff] %vm1127, %v1084
        %1155 = vst.msk [vmem:[#allocation3 + $0xd8] sm:$0xff] %vm1127, %v1086
        %1156 = vst.msk [vmem:[#allocation3 + $0xe0] sm:$0xff] %vm1127, %v1088
        %1157 = vst.msk [vmem:[#allocation3 + $0xe8] sm:$0xff] %vm1127, %v1090
        %1158 = vst.msk [vmem:[#allocation3 + $0xf0] sm:$0xff] %vm1127, %v1092
        %1159 = vst.msk [vmem:[#allocation3 + $0xf8] sm:$0xff] %vm1127, %v1094
        %v1160 = vld [vmem:[%s258 + $0x2] sm:$0xff]
        %v1161 = vld [vmem:[%s258 + $0xa] sm:$0xff]
        %v1162 = vld [vmem:[%s258 + $0x1a] sm:$0xff]
        %v1163 = vld [vmem:[%s258 + $0x22] sm:$0xff]
        %v1164 = vld [vmem:[%s258 + $0x32] sm:$0xff]
        %v1165 = vld [vmem:[%s258 + $0x3a] sm:$0xff]
        %v1166 = vld [vmem:[%s258 + $0x4a] sm:$0xff]
        %v1167 = vld [vmem:[%s258 + $0x52] sm:$0xff]
        %v1168 = vld [vmem:[%s258 + $0x62] sm:$0xff]
        %v1169 = vld [vmem:[%s258 + $0x6a] sm:$0xff]
        %v1170 = vld [vmem:[%s258 + $0x7a] sm:$0xff]
        %v1171 = vld [vmem:[%s258 + $0x82] sm:$0xff]
        %v1172 = vld [vmem:[%s258 + $0x92] sm:$0xff]
        %v1173 = vld [vmem:[%s258 + $0x9a] sm:$0xff]
        %v1174 = vld [vmem:[%s258 + $0xaa] sm:$0xff]
        %v1175 = vld [vmem:[%s258 + $0xb2] sm:$0xff]
        %v1176 = vld [vmem:[%s258 + $0xc2] sm:$0xff]
        %v1177 = vld [vmem:[%s258 + $0xca] sm:$0xff]
        %v1178 = vld [vmem:[%s258 + $0xda] sm:$0xff]
        %v1179 = vld [vmem:[%s258 + $0xe2] sm:$0xff]
        %v1180 = vld [vmem:[%s258 + $0xf2] sm:$0xff]
        %v1181 = vld [vmem:[%s258 + $0xfa] sm:$0xff]
        %v1182 = vld [vmem:[%s258 + $0x10a] sm:$0xff]
        %v1183 = vld [vmem:[%s258 + $0x112] sm:$0xff]
        %v1184 = vld [vmem:[%s258 + $0x122] sm:$0xff]
        %v1185 = vld [vmem:[%s258 + $0x12a] sm:$0xff]
        %v1186 = vld [vmem:[%s258 + $0x13a] sm:$0xff]
        %v1187 = vld [vmem:[%s258 + $0x142] sm:$0xff]
        %v1188 = vld [vmem:[%s258 + $0x152] sm:$0xff]
        %v1189 = vld [vmem:[%s258 + $0x15a] sm:$0xff]
        %v1190 = vld [vmem:[%s258 + $0x16a] sm:$0xff]
        %v1191 = vld [vmem:[%s258 + $0x172] sm:$0xff]
        %1224 = vrot.lane.b32.xlu0 %v1160, 20
        %v1225 = vpop.permute.xlu0 %1224
        %1226 = vrot.lane.b32.xlu0 %v1161, 20
        %v1227 = vpop.permute.xlu0 %1226
        %1228 = vrot.lane.b32.xlu0 %v1162, 20
        %v1229 = vpop.permute.xlu0 %1228
        %1230 = vrot.lane.b32.xlu0 %v1163, 20
        %v1231 = vpop.permute.xlu0 %1230
        %1232 = vrot.lane.b32.xlu0 %v1164, 20
        %v1233 = vpop.permute.xlu0 %1232
        %1234 = vrot.lane.b32.xlu0 %v1165, 20
        %v1235 = vpop.permute.xlu0 %1234
        %1236 = vrot.lane.b32.xlu0 %v1166, 20
        %v1237 = vpop.permute.xlu0 %1236
        %1238 = vrot.lane.b32.xlu0 %v1167, 20
        %v1239 = vpop.permute.xlu0 %1238
        %1240 = vrot.lane.b32.xlu0 %v1168, 20
        %v1241 = vpop.permute.xlu0 %1240
        %1242 = vrot.lane.b32.xlu0 %v1169, 20
        %v1243 = vpop.permute.xlu0 %1242
        %1244 = vrot.lane.b32.xlu0 %v1170, 20
        %v1245 = vpop.permute.xlu0 %1244
        %1246 = vrot.lane.b32.xlu0 %v1171, 20
        %v1247 = vpop.permute.xlu0 %1246
        %1248 = vrot.lane.b32.xlu0 %v1172, 20
        %v1249 = vpop.permute.xlu0 %1248
        %1250 = vrot.lane.b32.xlu0 %v1173, 20
        %v1251 = vpop.permute.xlu0 %1250
        %1252 = vrot.lane.b32.xlu0 %v1174, 20
        %v1253 = vpop.permute.xlu0 %1252
        %1254 = vrot.lane.b32.xlu0 %v1175, 20
        %v1255 = vpop.permute.xlu0 %1254
        %1256 = vrot.lane.b32.xlu0 %v1176, 20
        %v1257 = vpop.permute.xlu0 %1256
        %1258 = vrot.lane.b32.xlu0 %v1177, 20
        %v1259 = vpop.permute.xlu0 %1258
        %1260 = vrot.lane.b32.xlu0 %v1178, 20
        %v1261 = vpop.permute.xlu0 %1260
        %1262 = vrot.lane.b32.xlu0 %v1179, 20
        %v1263 = vpop.permute.xlu0 %1262
        %1264 = vrot.lane.b32.xlu0 %v1180, 20
        %v1265 = vpop.permute.xlu0 %1264
        %1266 = vrot.lane.b32.xlu0 %v1181, 20
        %v1267 = vpop.permute.xlu0 %1266
        %1268 = vrot.lane.b32.xlu0 %v1182, 20
        %v1269 = vpop.permute.xlu0 %1268
        %1270 = vrot.lane.b32.xlu0 %v1183, 20
        %v1271 = vpop.permute.xlu0 %1270
        %1272 = vrot.lane.b32.xlu0 %v1184, 20
        %v1273 = vpop.permute.xlu0 %1272
        %1274 = vrot.lane.b32.xlu0 %v1185, 20
        %v1275 = vpop.permute.xlu0 %1274
        %1276 = vrot.lane.b32.xlu0 %v1186, 20
        %v1277 = vpop.permute.xlu0 %1276
        %1278 = vrot.lane.b32.xlu0 %v1187, 20
        %v1279 = vpop.permute.xlu0 %1278
        %1280 = vrot.lane.b32.xlu0 %v1188, 20
        %v1281 = vpop.permute.xlu0 %1280
        %1282 = vrot.lane.b32.xlu0 %v1189, 20
        %v1283 = vpop.permute.xlu0 %1282
        %1284 = vrot.lane.b32.xlu0 %v1190, 20
        %v1285 = vpop.permute.xlu0 %1284
        %1286 = vrot.lane.b32.xlu0 %v1191, 20
        %v1287 = vpop.permute.xlu0 %1286
        %vm1320 = vcmask 195744
        %1321 = vst.msk [vmem:[#allocation3] sm:$0xff] %vm1320, %v1225
        %1322 = vst.msk [vmem:[#allocation3 + $0x8] sm:$0xff] %vm1320, %v1227
        %1323 = vst.msk [vmem:[#allocation3 + $0x10] sm:$0xff] %vm1320, %v1229
        %1324 = vst.msk [vmem:[#allocation3 + $0x18] sm:$0xff] %vm1320, %v1231
        %1325 = vst.msk [vmem:[#allocation3 + $0x20] sm:$0xff] %vm1320, %v1233
        %1326 = vst.msk [vmem:[#allocation3 + $0x28] sm:$0xff] %vm1320, %v1235
        %1327 = vst.msk [vmem:[#allocation3 + $0x30] sm:$0xff] %vm1320, %v1237
        %1328 = vst.msk [vmem:[#allocation3 + $0x38] sm:$0xff] %vm1320, %v1239
        %1329 = vst.msk [vmem:[#allocation3 + $0x40] sm:$0xff] %vm1320, %v1241
        %1330 = vst.msk [vmem:[#allocation3 + $0x48] sm:$0xff] %vm1320, %v1243
        %1331 = vst.msk [vmem:[#allocation3 + $0x50] sm:$0xff] %vm1320, %v1245
        %1332 = vst.msk [vmem:[#allocation3 + $0x58] sm:$0xff] %vm1320, %v1247
        %1333 = vst.msk [vmem:[#allocation3 + $0x60] sm:$0xff] %vm1320, %v1249
        %1334 = vst.msk [vmem:[#allocation3 + $0x68] sm:$0xff] %vm1320, %v1251
        %1335 = vst.msk [vmem:[#allocation3 + $0x70] sm:$0xff] %vm1320, %v1253
        %1336 = vst.msk [vmem:[#allocation3 + $0x78] sm:$0xff] %vm1320, %v1255
        %1337 = vst.msk [vmem:[#allocation3 + $0x80] sm:$0xff] %vm1320, %v1257
        %1338 = vst.msk [vmem:[#allocation3 + $0x88] sm:$0xff] %vm1320, %v1259
        %1339 = vst.msk [vmem:[#allocation3 + $0x90] sm:$0xff] %vm1320, %v1261
        %1340 = vst.msk [vmem:[#allocation3 + $0x98] sm:$0xff] %vm1320, %v1263
        %1341 = vst.msk [vmem:[#allocation3 + $0xa0] sm:$0xff] %vm1320, %v1265
        %1342 = vst.msk [vmem:[#allocation3 + $0xa8] sm:$0xff] %vm1320, %v1267
        %1343 = vst.msk [vmem:[#allocation3 + $0xb0] sm:$0xff] %vm1320, %v1269
        %1344 = vst.msk [vmem:[#allocation3 + $0xb8] sm:$0xff] %vm1320, %v1271
        %1345 = vst.msk [vmem:[#allocation3 + $0xc0] sm:$0xff] %vm1320, %v1273
        %1346 = vst.msk [vmem:[#allocation3 + $0xc8] sm:$0xff] %vm1320, %v1275
        %1347 = vst.msk [vmem:[#allocation3 + $0xd0] sm:$0xff] %vm1320, %v1277
        %1348 = vst.msk [vmem:[#allocation3 + $0xd8] sm:$0xff] %vm1320, %v1279
        %1349 = vst.msk [vmem:[#allocation3 + $0xe0] sm:$0xff] %vm1320, %v1281
        %1350 = vst.msk [vmem:[#allocation3 + $0xe8] sm:$0xff] %vm1320, %v1283
        %1351 = vst.msk [vmem:[#allocation3 + $0xf0] sm:$0xff] %vm1320, %v1285
        %1352 = vst.msk [vmem:[#allocation3 + $0xf8] sm:$0xff] %vm1320, %v1287
        %s1353 = scalar_lea.vmem [#allocation2], 48
        %v1354 = vld [vmem:[%s1353] sm:$0xff]
        %v1355 = vld [vmem:[%s1353 + $0x8] sm:$0xff]
        %v1356 = vld [vmem:[%s1353 + $0x18] sm:$0xff]
        %v1357 = vld [vmem:[%s1353 + $0x20] sm:$0xff]
        %v1358 = vld [vmem:[%s1353 + $0x30] sm:$0xff]
        %v1359 = vld [vmem:[%s1353 + $0x38] sm:$0xff]
        %v1360 = vld [vmem:[%s1353 + $0x48] sm:$0xff]
        %v1361 = vld [vmem:[%s1353 + $0x50] sm:$0xff]
        %v1362 = vld [vmem:[%s1353 + $0x60] sm:$0xff]
        %v1363 = vld [vmem:[%s1353 + $0x68] sm:$0xff]
        %v1364 = vld [vmem:[%s1353 + $0x78] sm:$0xff]
        %v1365 = vld [vmem:[%s1353 + $0x80] sm:$0xff]
        %v1366 = vld [vmem:[%s1353 + $0x90] sm:$0xff]
        %v1367 = vld [vmem:[%s1353 + $0x98] sm:$0xff]
        %v1368 = vld [vmem:[%s1353 + $0xa8] sm:$0xff]
        %v1369 = vld [vmem:[%s1353 + $0xb0] sm:$0xff]
        %v1370 = vld [vmem:[%s1353 + $0xc0] sm:$0xff]
        %v1371 = vld [vmem:[%s1353 + $0xc8] sm:$0xff]
        %v1372 = vld [vmem:[%s1353 + $0xd8] sm:$0xff]
        %v1373 = vld [vmem:[%s1353 + $0xe0] sm:$0xff]
        %v1374 = vld [vmem:[%s1353 + $0xf0] sm:$0xff]
        %v1375 = vld [vmem:[%s1353 + $0xf8] sm:$0xff]
        %v1376 = vld [vmem:[%s1353 + $0x108] sm:$0xff]
        %v1377 = vld [vmem:[%s1353 + $0x110] sm:$0xff]
        %v1378 = vld [vmem:[%s1353 + $0x120] sm:$0xff]
        %v1379 = vld [vmem:[%s1353 + $0x128] sm:$0xff]
        %v1380 = vld [vmem:[%s1353 + $0x138] sm:$0xff]
        %v1381 = vld [vmem:[%s1353 + $0x140] sm:$0xff]
        %v1382 = vld [vmem:[%s1353 + $0x150] sm:$0xff]
        %v1383 = vld [vmem:[%s1353 + $0x158] sm:$0xff]
        %v1384 = vld [vmem:[%s1353 + $0x168] sm:$0xff]
        %v1385 = vld [vmem:[%s1353 + $0x170] sm:$0xff]
        %1418 = vrot.lane.b32.xlu0 %v1354, 24
        %v1419 = vpop.permute.xlu0 %1418
        %1420 = vrot.lane.b32.xlu0 %v1355, 24
        %v1421 = vpop.permute.xlu0 %1420
        %1422 = vrot.lane.b32.xlu0 %v1356, 24
        %v1423 = vpop.permute.xlu0 %1422
        %1424 = vrot.lane.b32.xlu0 %v1357, 24
        %v1425 = vpop.permute.xlu0 %1424
        %1426 = vrot.lane.b32.xlu0 %v1358, 24
        %v1427 = vpop.permute.xlu0 %1426
        %1428 = vrot.lane.b32.xlu0 %v1359, 24
        %v1429 = vpop.permute.xlu0 %1428
        %1430 = vrot.lane.b32.xlu0 %v1360, 24
        %v1431 = vpop.permute.xlu0 %1430
        %1432 = vrot.lane.b32.xlu0 %v1361, 24
        %v1433 = vpop.permute.xlu0 %1432
        %1434 = vrot.lane.b32.xlu0 %v1362, 24
        %v1435 = vpop.permute.xlu0 %1434
        %1436 = vrot.lane.b32.xlu0 %v1363, 24
        %v1437 = vpop.permute.xlu0 %1436
        %1438 = vrot.lane.b32.xlu0 %v1364, 24
        %v1439 = vpop.permute.xlu0 %1438
        %1440 = vrot.lane.b32.xlu0 %v1365, 24
        %v1441 = vpop.permute.xlu0 %1440
        %1442 = vrot.lane.b32.xlu0 %v1366, 24
        %v1443 = vpop.permute.xlu0 %1442
        %1444 = vrot.lane.b32.xlu0 %v1367, 24
        %v1445 = vpop.permute.xlu0 %1444
        %1446 = vrot.lane.b32.xlu0 %v1368, 24
        %v1447 = vpop.permute.xlu0 %1446
        %1448 = vrot.lane.b32.xlu0 %v1369, 24
        %v1449 = vpop.permute.xlu0 %1448
        %1450 = vrot.lane.b32.xlu0 %v1370, 24
        %v1451 = vpop.permute.xlu0 %1450
        %1452 = vrot.lane.b32.xlu0 %v1371, 24
        %v1453 = vpop.permute.xlu0 %1452
        %1454 = vrot.lane.b32.xlu0 %v1372, 24
        %v1455 = vpop.permute.xlu0 %1454
        %1456 = vrot.lane.b32.xlu0 %v1373, 24
        %v1457 = vpop.permute.xlu0 %1456
        %1458 = vrot.lane.b32.xlu0 %v1374, 24
        %v1459 = vpop.permute.xlu0 %1458
        %1460 = vrot.lane.b32.xlu0 %v1375, 24
        %v1461 = vpop.permute.xlu0 %1460
        %1462 = vrot.lane.b32.xlu0 %v1376, 24
        %v1463 = vpop.permute.xlu0 %1462
        %1464 = vrot.lane.b32.xlu0 %v1377, 24
        %v1465 = vpop.permute.xlu0 %1464
        %1466 = vrot.lane.b32.xlu0 %v1378, 24
        %v1467 = vpop.permute.xlu0 %1466
        %1468 = vrot.lane.b32.xlu0 %v1379, 24
        %v1469 = vpop.permute.xlu0 %1468
        %1470 = vrot.lane.b32.xlu0 %v1380, 24
        %v1471 = vpop.permute.xlu0 %1470
        %1472 = vrot.lane.b32.xlu0 %v1381, 24
        %v1473 = vpop.permute.xlu0 %1472
        %1474 = vrot.lane.b32.xlu0 %v1382, 24
        %v1475 = vpop.permute.xlu0 %1474
        %1476 = vrot.lane.b32.xlu0 %v1383, 24
        %v1477 = vpop.permute.xlu0 %1476
        %1478 = vrot.lane.b32.xlu0 %v1384, 24
        %v1479 = vpop.permute.xlu0 %1478
        %1480 = vrot.lane.b32.xlu0 %v1385, 24
        %v1481 = vpop.permute.xlu0 %1480
        %vm1514 = vcmask 228544
        %1515 = vst.msk [vmem:[#allocation3] sm:$0xff] %vm1514, %v1419
        %1516 = vst.msk [vmem:[#allocation3 + $0x8] sm:$0xff] %vm1514, %v1421
        %1517 = vst.msk [vmem:[#allocation3 + $0x10] sm:$0xff] %vm1514, %v1423
        %1518 = vst.msk [vmem:[#allocation3 + $0x18] sm:$0xff] %vm1514, %v1425
        %1519 = vst.msk [vmem:[#allocation3 + $0x20] sm:$0xff] %vm1514, %v1427
        %1520 = vst.msk [vmem:[#allocation3 + $0x28] sm:$0xff] %vm1514, %v1429
        %1521 = vst.msk [vmem:[#allocation3 + $0x30] sm:$0xff] %vm1514, %v1431
        %1522 = vst.msk [vmem:[#allocation3 + $0x38] sm:$0xff] %vm1514, %v1433
        %1523 = vst.msk [vmem:[#allocation3 + $0x40] sm:$0xff] %vm1514, %v1435
        %1524 = vst.msk [vmem:[#allocation3 + $0x48] sm:$0xff] %vm1514, %v1437
        %1525 = vst.msk [vmem:[#allocation3 + $0x50] sm:$0xff] %vm1514, %v1439
        %1526 = vst.msk [vmem:[#allocation3 + $0x58] sm:$0xff] %vm1514, %v1441
        %1527 = vst.msk [vmem:[#allocation3 + $0x60] sm:$0xff] %vm1514, %v1443
        %1528 = vst.msk [vmem:[#allocation3 + $0x68] sm:$0xff] %vm1514, %v1445
        %1529 = vst.msk [vmem:[#allocation3 + $0x70] sm:$0xff] %vm1514, %v1447
        %1530 = vst.msk [vmem:[#allocation3 + $0x78] sm:$0xff] %vm1514, %v1449
        %1531 = vst.msk [vmem:[#allocation3 + $0x80] sm:$0xff] %vm1514, %v1451
        %1532 = vst.msk [vmem:[#allocation3 + $0x88] sm:$0xff] %vm1514, %v1453
        %1533 = vst.msk [vmem:[#allocation3 + $0x90] sm:$0xff] %vm1514, %v1455
        %1534 = vst.msk [vmem:[#allocation3 + $0x98] sm:$0xff] %vm1514, %v1457
        %1535 = vst.msk [vmem:[#allocation3 + $0xa0] sm:$0xff] %vm1514, %v1459
        %1536 = vst.msk [vmem:[#allocation3 + $0xa8] sm:$0xff] %vm1514, %v1461
        %1537 = vst.msk [vmem:[#allocation3 + $0xb0] sm:$0xff] %vm1514, %v1463
        %1538 = vst.msk [vmem:[#allocation3 + $0xb8] sm:$0xff] %vm1514, %v1465
        %1539 = vst.msk [vmem:[#allocation3 + $0xc0] sm:$0xff] %vm1514, %v1467
        %1540 = vst.msk [vmem:[#allocation3 + $0xc8] sm:$0xff] %vm1514, %v1469
        %1541 = vst.msk [vmem:[#allocation3 + $0xd0] sm:$0xff] %vm1514, %v1471
        %1542 = vst.msk [vmem:[#allocation3 + $0xd8] sm:$0xff] %vm1514, %v1473
        %1543 = vst.msk [vmem:[#allocation3 + $0xe0] sm:$0xff] %vm1514, %v1475
        %1544 = vst.msk [vmem:[#allocation3 + $0xe8] sm:$0xff] %vm1514, %v1477
        %1545 = vst.msk [vmem:[#allocation3 + $0xf0] sm:$0xff] %vm1514, %v1479
        %1546 = vst.msk [vmem:[#allocation3 + $0xf8] sm:$0xff] %vm1514, %v1481
        %v1547 = vld [vmem:[%s1353 + $0x1] sm:$0xff]
        %v1548 = vld [vmem:[%s1353 + $0x9] sm:$0xff]
        %v1549 = vld [vmem:[%s1353 + $0x19] sm:$0xff]
        %v1550 = vld [vmem:[%s1353 + $0x21] sm:$0xff]
        %v1551 = vld [vmem:[%s1353 + $0x31] sm:$0xff]
        %v1552 = vld [vmem:[%s1353 + $0x39] sm:$0xff]
        %v1553 = vld [vmem:[%s1353 + $0x49] sm:$0xff]
        %v1554 = vld [vmem:[%s1353 + $0x51] sm:$0xff]
        %v1555 = vld [vmem:[%s1353 + $0x61] sm:$0xff]
        %v1556 = vld [vmem:[%s1353 + $0x69] sm:$0xff]
        %v1557 = vld [vmem:[%s1353 + $0x79] sm:$0xff]
        %v1558 = vld [vmem:[%s1353 + $0x81] sm:$0xff]
        %v1559 = vld [vmem:[%s1353 + $0x91] sm:$0xff]
        %v1560 = vld [vmem:[%s1353 + $0x99] sm:$0xff]
        %v1561 = vld [vmem:[%s1353 + $0xa9] sm:$0xff]
        %v1562 = vld [vmem:[%s1353 + $0xb1] sm:$0xff]
        %v1563 = vld [vmem:[%s1353 + $0xc1] sm:$0xff]
        %v1564 = vld [vmem:[%s1353 + $0xc9] sm:$0xff]
        %v1565 = vld [vmem:[%s1353 + $0xd9] sm:$0xff]
        %v1566 = vld [vmem:[%s1353 + $0xe1] sm:$0xff]
        %v1567 = vld [vmem:[%s1353 + $0xf1] sm:$0xff]
        %v1568 = vld [vmem:[%s1353 + $0xf9] sm:$0xff]
        %v1569 = vld [vmem:[%s1353 + $0x109] sm:$0xff]
        %v1570 = vld [vmem:[%s1353 + $0x111] sm:$0xff]
        %v1571 = vld [vmem:[%s1353 + $0x121] sm:$0xff]
        %v1572 = vld [vmem:[%s1353 + $0x129] sm:$0xff]
        %v1573 = vld [vmem:[%s1353 + $0x139] sm:$0xff]
        %v1574 = vld [vmem:[%s1353 + $0x141] sm:$0xff]
        %v1575 = vld [vmem:[%s1353 + $0x151] sm:$0xff]
        %v1576 = vld [vmem:[%s1353 + $0x159] sm:$0xff]
        %v1577 = vld [vmem:[%s1353 + $0x169] sm:$0xff]
        %v1578 = vld [vmem:[%s1353 + $0x171] sm:$0xff]
        %1611 = vrot.lane.b32.xlu0 %v1547, 28
        %v1612 = vpop.permute.xlu0 %1611
        %1613 = vrot.lane.b32.xlu0 %v1548, 28
        %v1614 = vpop.permute.xlu0 %1613
        %1615 = vrot.lane.b32.xlu0 %v1549, 28
        %v1616 = vpop.permute.xlu0 %1615
        %1617 = vrot.lane.b32.xlu0 %v1550, 28
        %v1618 = vpop.permute.xlu0 %1617
        %1619 = vrot.lane.b32.xlu0 %v1551, 28
        %v1620 = vpop.permute.xlu0 %1619
        %1621 = vrot.lane.b32.xlu0 %v1552, 28
        %v1622 = vpop.permute.xlu0 %1621
        %1623 = vrot.lane.b32.xlu0 %v1553, 28
        %v1624 = vpop.permute.xlu0 %1623
        %1625 = vrot.lane.b32.xlu0 %v1554, 28
        %v1626 = vpop.permute.xlu0 %1625
        %1627 = vrot.lane.b32.xlu0 %v1555, 28
        %v1628 = vpop.permute.xlu0 %1627
        %1629 = vrot.lane.b32.xlu0 %v1556, 28
        %v1630 = vpop.permute.xlu0 %1629
        %1631 = vrot.lane.b32.xlu0 %v1557, 28
        %v1632 = vpop.permute.xlu0 %1631
        %1633 = vrot.lane.b32.xlu0 %v1558, 28
        %v1634 = vpop.permute.xlu0 %1633
        %1635 = vrot.lane.b32.xlu0 %v1559, 28
        %v1636 = vpop.permute.xlu0 %1635
        %1637 = vrot.lane.b32.xlu0 %v1560, 28
        %v1638 = vpop.permute.xlu0 %1637
        %1639 = vrot.lane.b32.xlu0 %v1561, 28
        %v1640 = vpop.permute.xlu0 %1639
        %1641 = vrot.lane.b32.xlu0 %v1562, 28
        %v1642 = vpop.permute.xlu0 %1641
        %1643 = vrot.lane.b32.xlu0 %v1563, 28
        %v1644 = vpop.permute.xlu0 %1643
        %1645 = vrot.lane.b32.xlu0 %v1564, 28
        %v1646 = vpop.permute.xlu0 %1645
        %1647 = vrot.lane.b32.xlu0 %v1565, 28
        %v1648 = vpop.permute.xlu0 %1647
        %1649 = vrot.lane.b32.xlu0 %v1566, 28
        %v1650 = vpop.permute.xlu0 %1649
        %1651 = vrot.lane.b32.xlu0 %v1567, 28
        %v1652 = vpop.permute.xlu0 %1651
        %1653 = vrot.lane.b32.xlu0 %v1568, 28
        %v1654 = vpop.permute.xlu0 %1653
        %1655 = vrot.lane.b32.xlu0 %v1569, 28
        %v1656 = vpop.permute.xlu0 %1655
        %1657 = vrot.lane.b32.xlu0 %v1570, 28
        %v1658 = vpop.permute.xlu0 %1657
        %1659 = vrot.lane.b32.xlu0 %v1571, 28
        %v1660 = vpop.permute.xlu0 %1659
        %1661 = vrot.lane.b32.xlu0 %v1572, 28
        %v1662 = vpop.permute.xlu0 %1661
        %1663 = vrot.lane.b32.xlu0 %v1573, 28
        %v1664 = vpop.permute.xlu0 %1663
        %1665 = vrot.lane.b32.xlu0 %v1574, 28
        %v1666 = vpop.permute.xlu0 %1665
        %1667 = vrot.lane.b32.xlu0 %v1575, 28
        %v1668 = vpop.permute.xlu0 %1667
        %1669 = vrot.lane.b32.xlu0 %v1576, 28
        %v1670 = vpop.permute.xlu0 %1669
        %1671 = vrot.lane.b32.xlu0 %v1577, 28
        %v1672 = vpop.permute.xlu0 %1671
        %1673 = vrot.lane.b32.xlu0 %v1578, 28
        %v1674 = vpop.permute.xlu0 %1673
        %vm1707 = vcmask 261344
        %1708 = vst.msk [vmem:[#allocation3] sm:$0xff] %vm1707, %v1612
        %1709 = vst.msk [vmem:[#allocation3 + $0x8] sm:$0xff] %vm1707, %v1614
        %1710 = vst.msk [vmem:[#allocation3 + $0x10] sm:$0xff] %vm1707, %v1616
        %1711 = vst.msk [vmem:[#allocation3 + $0x18] sm:$0xff] %vm1707, %v1618
        %1712 = vst.msk [vmem:[#allocation3 + $0x20] sm:$0xff] %vm1707, %v1620
        %1713 = vst.msk [vmem:[#allocation3 + $0x28] sm:$0xff] %vm1707, %v1622
        %1714 = vst.msk [vmem:[#allocation3 + $0x30] sm:$0xff] %vm1707, %v1624
        %1715 = vst.msk [vmem:[#allocation3 + $0x38] sm:$0xff] %vm1707, %v1626
        %1716 = vst.msk [vmem:[#allocation3 + $0x40] sm:$0xff] %vm1707, %v1628
        %1717 = vst.msk [vmem:[#allocation3 + $0x48] sm:$0xff] %vm1707, %v1630
        %1718 = vst.msk [vmem:[#allocation3 + $0x50] sm:$0xff] %vm1707, %v1632
        %1719 = vst.msk [vmem:[#allocation3 + $0x58] sm:$0xff] %vm1707, %v1634
        %1720 = vst.msk [vmem:[#allocation3 + $0x60] sm:$0xff] %vm1707, %v1636
        %1721 = vst.msk [vmem:[#allocation3 + $0x68] sm:$0xff] %vm1707, %v1638
        %1722 = vst.msk [vmem:[#allocation3 + $0x70] sm:$0xff] %vm1707, %v1640
        %1723 = vst.msk [vmem:[#allocation3 + $0x78] sm:$0xff] %vm1707, %v1642
        %1724 = vst.msk [vmem:[#allocation3 + $0x80] sm:$0xff] %vm1707, %v1644
        %1725 = vst.msk [vmem:[#allocation3 + $0x88] sm:$0xff] %vm1707, %v1646
        %1726 = vst.msk [vmem:[#allocation3 + $0x90] sm:$0xff] %vm1707, %v1648
        %1727 = vst.msk [vmem:[#allocation3 + $0x98] sm:$0xff] %vm1707, %v1650
        %1728 = vst.msk [vmem:[#allocation3 + $0xa0] sm:$0xff] %vm1707, %v1652
        %1729 = vst.msk [vmem:[#allocation3 + $0xa8] sm:$0xff] %vm1707, %v1654
        %1730 = vst.msk [vmem:[#allocation3 + $0xb0] sm:$0xff] %vm1707, %v1656
        %1731 = vst.msk [vmem:[#allocation3 + $0xb8] sm:$0xff] %vm1707, %v1658
        %1732 = vst.msk [vmem:[#allocation3 + $0xc0] sm:$0xff] %vm1707, %v1660
        %1733 = vst.msk [vmem:[#allocation3 + $0xc8] sm:$0xff] %vm1707, %v1662
        %1734 = vst.msk [vmem:[#allocation3 + $0xd0] sm:$0xff] %vm1707, %v1664
        %1735 = vst.msk [vmem:[#allocation3 + $0xd8] sm:$0xff] %vm1707, %v1666
        %1736 = vst.msk [vmem:[#allocation3 + $0xe0] sm:$0xff] %vm1707, %v1668
        %1737 = vst.msk [vmem:[#allocation3 + $0xe8] sm:$0xff] %vm1707, %v1670
        %1738 = vst.msk [vmem:[#allocation3 + $0xf0] sm:$0xff] %vm1707, %v1672
        %1739 = vst.msk [vmem:[#allocation3 + $0xf8] sm:$0xff] %vm1707, %v1674
        %v1740 = vld [vmem:[%s1353 + $0x2] sm:$0xff]
        %v1741 = vld [vmem:[%s1353 + $0xa] sm:$0xff]
        %v1742 = vld [vmem:[%s1353 + $0x1a] sm:$0xff]
        %v1743 = vld [vmem:[%s1353 + $0x22] sm:$0xff]
        %v1744 = vld [vmem:[%s1353 + $0x32] sm:$0xff]
        %v1745 = vld [vmem:[%s1353 + $0x3a] sm:$0xff]
        %v1746 = vld [vmem:[%s1353 + $0x4a] sm:$0xff]
        %v1747 = vld [vmem:[%s1353 + $0x52] sm:$0xff]
        %v1748 = vld [vmem:[%s1353 + $0x62] sm:$0xff]
        %v1749 = vld [vmem:[%s1353 + $0x6a] sm:$0xff]
        %v1750 = vld [vmem:[%s1353 + $0x7a] sm:$0xff]
        %v1751 = vld [vmem:[%s1353 + $0x82] sm:$0xff]
        %v1752 = vld [vmem:[%s1353 + $0x92] sm:$0xff]
        %v1753 = vld [vmem:[%s1353 + $0x9a] sm:$0xff]
        %v1754 = vld [vmem:[%s1353 + $0xaa] sm:$0xff]
        %v1755 = vld [vmem:[%s1353 + $0xb2] sm:$0xff]
        %v1756 = vld [vmem:[%s1353 + $0xc2] sm:$0xff]
        %v1757 = vld [vmem:[%s1353 + $0xca] sm:$0xff]
        %v1758 = vld [vmem:[%s1353 + $0xda] sm:$0xff]
        %v1759 = vld [vmem:[%s1353 + $0xe2] sm:$0xff]
        %v1760 = vld [vmem:[%s1353 + $0xf2] sm:$0xff]
        %v1761 = vld [vmem:[%s1353 + $0xfa] sm:$0xff]
        %v1762 = vld [vmem:[%s1353 + $0x10a] sm:$0xff]
        %v1763 = vld [vmem:[%s1353 + $0x112] sm:$0xff]
        %v1764 = vld [vmem:[%s1353 + $0x122] sm:$0xff]
        %v1765 = vld [vmem:[%s1353 + $0x12a] sm:$0xff]
        %v1766 = vld [vmem:[%s1353 + $0x13a] sm:$0xff]
        %v1767 = vld [vmem:[%s1353 + $0x142] sm:$0xff]
        %v1768 = vld [vmem:[%s1353 + $0x152] sm:$0xff]
        %v1769 = vld [vmem:[%s1353 + $0x15a] sm:$0xff]
        %v1770 = vld [vmem:[%s1353 + $0x16a] sm:$0xff]
        %v1771 = vld [vmem:[%s1353 + $0x172] sm:$0xff]
        %1804 = vrot.lane.b32.xlu0 %v1740, 32
        %v1805 = vpop.permute.xlu0 %1804
        %1806 = vrot.lane.b32.xlu0 %v1741, 32
        %v1807 = vpop.permute.xlu0 %1806
        %1808 = vrot.lane.b32.xlu0 %v1742, 32
        %v1809 = vpop.permute.xlu0 %1808
        %1810 = vrot.lane.b32.xlu0 %v1743, 32
        %v1811 = vpop.permute.xlu0 %1810
        %1812 = vrot.lane.b32.xlu0 %v1744, 32
        %v1813 = vpop.permute.xlu0 %1812
        %1814 = vrot.lane.b32.xlu0 %v1745, 32
        %v1815 = vpop.permute.xlu0 %1814
        %1816 = vrot.lane.b32.xlu0 %v1746, 32
        %v1817 = vpop.permute.xlu0 %1816
        %1818 = vrot.lane.b32.xlu0 %v1747, 32
        %v1819 = vpop.permute.xlu0 %1818
        %1820 = vrot.lane.b32.xlu0 %v1748, 32
        %v1821 = vpop.permute.xlu0 %1820
        %1822 = vrot.lane.b32.xlu0 %v1749, 32
        %v1823 = vpop.permute.xlu0 %1822
        %1824 = vrot.lane.b32.xlu0 %v1750, 32
        %v1825 = vpop.permute.xlu0 %1824
        %1826 = vrot.lane.b32.xlu0 %v1751, 32
        %v1827 = vpop.permute.xlu0 %1826
        %1828 = vrot.lane.b32.xlu0 %v1752, 32
        %v1829 = vpop.permute.xlu0 %1828
        %1830 = vrot.lane.b32.xlu0 %v1753, 32
        %v1831 = vpop.permute.xlu0 %1830
        %1832 = vrot.lane.b32.xlu0 %v1754, 32
        %v1833 = vpop.permute.xlu0 %1832
        %1834 = vrot.lane.b32.xlu0 %v1755, 32
        %v1835 = vpop.permute.xlu0 %1834
        %1836 = vrot.lane.b32.xlu0 %v1756, 32
        %v1837 = vpop.permute.xlu0 %1836
        %1838 = vrot.lane.b32.xlu0 %v1757, 32
        %v1839 = vpop.permute.xlu0 %1838
        %1840 = vrot.lane.b32.xlu0 %v1758, 32
        %v1841 = vpop.permute.xlu0 %1840
        %1842 = vrot.lane.b32.xlu0 %v1759, 32
        %v1843 = vpop.permute.xlu0 %1842
        %1844 = vrot.lane.b32.xlu0 %v1760, 32
        %v1845 = vpop.permute.xlu0 %1844
        %1846 = vrot.lane.b32.xlu0 %v1761, 32
        %v1847 = vpop.permute.xlu0 %1846
        %1848 = vrot.lane.b32.xlu0 %v1762, 32
        %v1849 = vpop.permute.xlu0 %1848
        %1850 = vrot.lane.b32.xlu0 %v1763, 32
        %v1851 = vpop.permute.xlu0 %1850
        %1852 = vrot.lane.b32.xlu0 %v1764, 32
        %v1853 = vpop.permute.xlu0 %1852
        %1854 = vrot.lane.b32.xlu0 %v1765, 32
        %v1855 = vpop.permute.xlu0 %1854
        %1856 = vrot.lane.b32.xlu0 %v1766, 32
        %v1857 = vpop.permute.xlu0 %1856
        %1858 = vrot.lane.b32.xlu0 %v1767, 32
        %v1859 = vpop.permute.xlu0 %1858
        %1860 = vrot.lane.b32.xlu0 %v1768, 32
        %v1861 = vpop.permute.xlu0 %1860
        %1862 = vrot.lane.b32.xlu0 %v1769, 32
        %v1863 = vpop.permute.xlu0 %1862
        %1864 = vrot.lane.b32.xlu0 %v1770, 32
        %v1865 = vpop.permute.xlu0 %1864
        %1866 = vrot.lane.b32.xlu0 %v1771, 32
        %v1867 = vpop.permute.xlu0 %1866
        %vm1900 = vcmask 294144
        %1901 = vst.msk [vmem:[#allocation3] sm:$0xff] %vm1900, %v1805
        %1902 = vst.msk [vmem:[#allocation3 + $0x8] sm:$0xff] %vm1900, %v1807
        %1903 = vst.msk [vmem:[#allocation3 + $0x10] sm:$0xff] %vm1900, %v1809
        %1904 = vst.msk [vmem:[#allocation3 + $0x18] sm:$0xff] %vm1900, %v1811
        %1905 = vst.msk [vmem:[#allocation3 + $0x20] sm:$0xff] %vm1900, %v1813
        %1906 = vst.msk [vmem:[#allocation3 + $0x28] sm:$0xff] %vm1900, %v1815
        %1907 = vst.msk [vmem:[#allocation3 + $0x30] sm:$0xff] %vm1900, %v1817
        %1908 = vst.msk [vmem:[#allocation3 + $0x38] sm:$0xff] %vm1900, %v1819
        %1909 = vst.msk [vmem:[#allocation3 + $0x40] sm:$0xff] %vm1900, %v1821
        %1910 = vst.msk [vmem:[#allocation3 + $0x48] sm:$0xff] %vm1900, %v1823
        %1911 = vst.msk [vmem:[#allocation3 + $0x50] sm:$0xff] %vm1900, %v1825
        %1912 = vst.msk [vmem:[#allocation3 + $0x58] sm:$0xff] %vm1900, %v1827
        %1913 = vst.msk [vmem:[#allocation3 + $0x60] sm:$0xff] %vm1900, %v1829
        %1914 = vst.msk [vmem:[#allocation3 + $0x68] sm:$0xff] %vm1900, %v1831
        %1915 = vst.msk [vmem:[#allocation3 + $0x70] sm:$0xff] %vm1900, %v1833
        %1916 = vst.msk [vmem:[#allocation3 + $0x78] sm:$0xff] %vm1900, %v1835
        %1917 = vst.msk [vmem:[#allocation3 + $0x80] sm:$0xff] %vm1900, %v1837
        %1918 = vst.msk [vmem:[#allocation3 + $0x88] sm:$0xff] %vm1900, %v1839
        %1919 = vst.msk [vmem:[#allocation3 + $0x90] sm:$0xff] %vm1900, %v1841
        %1920 = vst.msk [vmem:[#allocation3 + $0x98] sm:$0xff] %vm1900, %v1843
        %1921 = vst.msk [vmem:[#allocation3 + $0xa0] sm:$0xff] %vm1900, %v1845
        %1922 = vst.msk [vmem:[#allocation3 + $0xa8] sm:$0xff] %vm1900, %v1847
        %1923 = vst.msk [vmem:[#allocation3 + $0xb0] sm:$0xff] %vm1900, %v1849
        %1924 = vst.msk [vmem:[#allocation3 + $0xb8] sm:$0xff] %vm1900, %v1851
        %1925 = vst.msk [vmem:[#allocation3 + $0xc0] sm:$0xff] %vm1900, %v1853
        %1926 = vst.msk [vmem:[#allocation3 + $0xc8] sm:$0xff] %vm1900, %v1855
        %1927 = vst.msk [vmem:[#allocation3 + $0xd0] sm:$0xff] %vm1900, %v1857
        %1928 = vst.msk [vmem:[#allocation3 + $0xd8] sm:$0xff] %vm1900, %v1859
        %1929 = vst.msk [vmem:[#allocation3 + $0xe0] sm:$0xff] %vm1900, %v1861
        %1930 = vst.msk [vmem:[#allocation3 + $0xe8] sm:$0xff] %vm1900, %v1863
        %1931 = vst.msk [vmem:[#allocation3 + $0xf0] sm:$0xff] %vm1900, %v1865
        %1932 = vst.msk [vmem:[#allocation3 + $0xf8] sm:$0xff] %vm1900, %v1867
        %v1933 = vld [vmem:[#allocation3] sm:$0xff]
        %v1934 = vld [vmem:[#allocation3 + $0x8] sm:$0xff]
        %v1935 = vld [vmem:[#allocation3 + $0x10] sm:$0xff]
        %v1936 = vld [vmem:[#allocation3 + $0x18] sm:$0xff]
        %v1937 = vld [vmem:[#allocation3 + $0x20] sm:$0xff]
        %v1938 = vld [vmem:[#allocation3 + $0x28] sm:$0xff]
        %v1939 = vld [vmem:[#allocation3 + $0x30] sm:$0xff]
        %v1940 = vld [vmem:[#allocation3 + $0x38] sm:$0xff]
        %v1941 = vld [vmem:[#allocation3 + $0x40] sm:$0xff]
        %v1942 = vld [vmem:[#allocation3 + $0x48] sm:$0xff]
        %v1943 = vld [vmem:[#allocation3 + $0x50] sm:$0xff]
        %v1944 = vld [vmem:[#allocation3 + $0x58] sm:$0xff]
        %v1945 = vld [vmem:[#allocation3 + $0x60] sm:$0xff]
        %v1946 = vld [vmem:[#allocation3 + $0x68] sm:$0xff]
        %v1947 = vld [vmem:[#allocation3 + $0x70] sm:$0xff]
        %v1948 = vld [vmem:[#allocation3 + $0x78] sm:$0xff]
        %v1949 = vld [vmem:[#allocation3 + $0x80] sm:$0xff]
        %v1950 = vld [vmem:[#allocation3 + $0x88] sm:$0xff]
        %v1951 = vld [vmem:[#allocation3 + $0x90] sm:$0xff]
        %v1952 = vld [vmem:[#allocation3 + $0x98] sm:$0xff]
        %v1953 = vld [vmem:[#allocation3 + $0xa0] sm:$0xff]
        %v1954 = vld [vmem:[#allocation3 + $0xa8] sm:$0xff]
        %v1955 = vld [vmem:[#allocation3 + $0xb0] sm:$0xff]
        %v1956 = vld [vmem:[#allocation3 + $0xb8] sm:$0xff]
        %v1957 = vld [vmem:[#allocation3 + $0xc0] sm:$0xff]
        %v1958 = vld [vmem:[#allocation3 + $0xc8] sm:$0xff]
        %v1959 = vld [vmem:[#allocation3 + $0xd0] sm:$0xff]
        %v1960 = vld [vmem:[#allocation3 + $0xd8] sm:$0xff]
        %v1961 = vld [vmem:[#allocation3 + $0xe0] sm:$0xff]
        %v1962 = vld [vmem:[#allocation3 + $0xe8] sm:$0xff]
        %v1963 = vld [vmem:[#allocation3 + $0xf0] sm:$0xff]
        %v1964 = vld [vmem:[#allocation3 + $0xf8] sm:$0xff]
        %v1965 = vld [vmem:[%s1] sm:$0xff]
        %v1966 = vld [vmem:[%s1 + $0x8] sm:$0xff]
        %v1967 = vld [vmem:[%s1 + $0x10] sm:$0xff]
        %v1968 = vld [vmem:[%s1 + $0x18] sm:$0xff]
        %v1969 = vld [vmem:[%s1 + $0x20] sm:$0xf]
        %vm1970 = vcmask 293888
        %v1972 = vsel %vm1970, %v1933, 0
        %v1975 = vsel %vm1970, %v1934, 0
        %v1978 = vsel %vm1970, %v1935, 0
        %v1981 = vsel %vm1970, %v1936, 0
        %v1984 = vsel %vm1970, %v1937, 0
        %v1987 = vsel %vm1970, %v1938, 0
        %v1990 = vsel %vm1970, %v1939, 0
        %v1993 = vsel %vm1970, %v1940, 0
        %v1996 = vsel %vm1970, %v1941, 0
        %v1999 = vsel %vm1970, %v1942, 0
        %v2002 = vsel %vm1970, %v1943, 0
        %v2005 = vsel %vm1970, %v1944, 0
        %v2008 = vsel %vm1970, %v1945, 0
        %v2011 = vsel %vm1970, %v1946, 0
        %v2014 = vsel %vm1970, %v1947, 0
        %v2017 = vsel %vm1970, %v1948, 0
        %v2020 = vsel %vm1970, %v1949, 0
        %v2023 = vsel %vm1970, %v1950, 0
        %v2026 = vsel %vm1970, %v1951, 0
        %v2029 = vsel %vm1970, %v1952, 0
        %v2032 = vsel %vm1970, %v1953, 0
        %v2035 = vsel %vm1970, %v1954, 0
        %v2038 = vsel %vm1970, %v1955, 0
        %v2041 = vsel %vm1970, %v1956, 0
        %v2044 = vsel %vm1970, %v1957, 0
        %v2047 = vsel %vm1970, %v1958, 0
        %v2050 = vsel %vm1970, %v1959, 0
        %v2053 = vsel %vm1970, %v1960, 0
        %v2056 = vsel %vm1970, %v1961, 0
        %v2059 = vsel %vm1970, %v1962, 0
        %v2062 = vsel %vm1970, %v1963, 0
        %v2065 = vsel %vm1970, %v1964, 0
        %vm2067 = vcmask 1043456
        %v2069 = vsel %vm2067, %v1969, 0
        %2071 = vmatprep.subr.mxu0 0.0
        %2072 = vmatpush1.msra.mxu0 %v1965
        %2073 = vmatprep.subr.mxu0 0.0
        %2074 = vmatpush1.msra.mxu0 %v1966
        %2075 = vmatprep.subr.mxu0 0.0
        %2076 = vmatpush1.msra.mxu0 %v1967
        %2077 = vmatprep.subr.mxu0 0.0
        %2078 = vmatpush1.msra.mxu0 %v1968
        %2079 = vmatprep.subr.mxu0 0.0
        %2080 = vmatpush1.msra.mxu0 %v2069
        %2081 = vmatprep.subr.mxu0 0.0
        %2082 = vmatpush1.msra.mxu0 0.0
        %2083 = vmatprep.subr.mxu0 0.0
        %2084 = vmatpush1.msra.mxu0 0.0
        %2085 = vmatprep.subr.mxu0 0.0
        %2086 = vmatpush1.msra.mxu0 0.0
        %2087 = vmatprep.subr.mxu0 0.0
        %2088 = vmatpush1.msra.mxu0 0.0
        %2089 = vmatprep.subr.mxu0 0.0
        %2090 = vmatpush1.msra.mxu0 0.0
        %2091 = vmatprep.subr.mxu0 0.0
        %2092 = vmatpush1.msra.mxu0 0.0
        %2093 = vmatprep.subr.mxu0 0.0
        %2094 = vmatpush1.msra.mxu0 0.0
        %2095 = vmatprep.subr.mxu0 0.0
        %2096 = vmatpush1.msra.mxu0 0.0
        %2097 = vmatprep.subr.mxu0 0.0
        %2098 = vmatpush1.msra.mxu0 0.0
        %2099 = vmatprep.subr.mxu0 0.0
        %2100 = vmatpush1.msra.mxu0 0.0
        %2101 = vmatprep.subr.mxu0 0.0
        %2102 = vmatpush1.msra.mxu0 0.0
        %2103 = vmatprep.subr.mxu0 0.0
        %2104 = vmatpush1.msra.mxu0 0.0
        %2105 = vmatprep.subr.mxu0 0.0
        %2106 = vmatpush1.msra.mxu0 0.0
        %2107 = vmatprep.subr.mxu0 0.0
        %2108 = vmatpush1.msra.mxu0 0.0
        %2109 = vmatprep.subr.mxu0 0.0
        %2110 = vmatpush1.msra.mxu0 0.0
        %2111 = vmatprep.subr.mxu0 0.0
        %2112 = vmatpush1.msra.mxu0 0.0
        %2113 = vmatprep.subr.mxu0 0.0
        %2114 = vmatpush1.msra.mxu0 0.0
        %2115 = vmatprep.subr.mxu0 0.0
        %2116 = vmatpush1.msra.mxu0 0.0
        %2117 = vmatprep.subr.mxu0 0.0
        %2118 = vmatpush1.msra.mxu0 0.0
        %2119 = vmatprep.subr.mxu0 0.0
        %2120 = vmatpush1.msra.mxu0 0.0
        %2121 = vmatprep.subr.mxu0 0.0
        %2122 = vmatpush1.msra.mxu0 0.0
        %2123 = vmatprep.subr.mxu0 0.0
        %2124 = vmatpush1.msra.mxu0 0.0
        %2125 = vmatprep.subr.mxu0 0.0
        %2126 = vmatpush1.msra.mxu0 0.0
        %2127 = vmatprep.subr.mxu0 0.0
        %2128 = vmatpush1.msra.mxu0 0.0
        %2129 = vmatprep.subr.mxu0 0.0
        %2130 = vmatpush1.msra.mxu0 0.0
        %2131 = vmatprep.subr.mxu0 0.0
        %2132 = vmatpush1.msra.mxu0 0.0
        %2133 = vmatprep.subr.mxu0 0.0
        %2134 = vmatpush1.msra.mxu0 0.0
        %2135 = vmatprep.mubr.f32.mxu0 0.0
        %2136 = vmatmul.mubr.f32.gmra.mrb[0].mxu0 %v1972
        %v2137 = vpop.f32.mrb[0].mxu0
        %v2138 = vadd.f32 0.0, %v2137
        %v2139 = vpop.f32.mrb[0].mxu0
        %2140 = vmatprep.mubr.f32.mxu0 0.0
        %2141 = vmatmul.mubr.f32.gmra.mrb[0].mxu0 %v1975
        %v2142 = vpop.f32.mrb[0].mxu0
        %v2143 = vadd.f32 0.0, %v2142
        %v2144 = vpop.f32.mrb[0].mxu0
        %2145 = vmatprep.mubr.f32.mxu0 0.0
        %2146 = vmatmul.mubr.f32.gmra.mrb[0].mxu0 %v1978
        %v2147 = vpop.f32.mrb[0].mxu0
        %v2148 = vadd.f32 0.0, %v2147
        %v2149 = vpop.f32.mrb[0].mxu0
        %2150 = vmatprep.mubr.f32.mxu0 0.0
        %2151 = vmatmul.mubr.f32.gmra.mrb[0].mxu0 %v1981
        %v2152 = vpop.f32.mrb[0].mxu0
        %v2153 = vadd.f32 0.0, %v2152
        %v2154 = vpop.f32.mrb[0].mxu0
        %2155 = vmatprep.mubr.f32.mxu0 0.0
        %2156 = vmatmul.mubr.f32.gmra.mrb[0].mxu0 %v1984
        %v2157 = vpop.f32.mrb[0].mxu0
        %v2158 = vadd.f32 0.0, %v2157
        %v2159 = vpop.f32.mrb[0].mxu0
        %2160 = vmatprep.mubr.f32.mxu0 0.0
        %2161 = vmatmul.mubr.f32.gmra.mrb[0].mxu0 %v1987
        %v2162 = vpop.f32.mrb[0].mxu0
        %v2163 = vadd.f32 0.0, %v2162
        %v2164 = vpop.f32.mrb[0].mxu0
        %2165 = vmatprep.mubr.f32.mxu0 0.0
        %2166 = vmatmul.mubr.f32.gmra.mrb[0].mxu0 %v1990
        %v2167 = vpop.f32.mrb[0].mxu0
        %v2168 = vadd.f32 0.0, %v2167
        %v2169 = vpop.f32.mrb[0].mxu0
        %2170 = vmatprep.mubr.f32.mxu0 0.0
        %2171 = vmatmul.mubr.f32.gmra.mrb[0].mxu0 %v1993
        %v2172 = vpop.f32.mrb[0].mxu0
        %v2173 = vadd.f32 0.0, %v2172
        %v2174 = vpop.f32.mrb[0].mxu0
        %2175 = vmatprep.mubr.f32.mxu0 0.0
        %2176 = vmatmul.mubr.f32.gmra.mrb[0].mxu0 %v1996
        %v2177 = vpop.f32.mrb[0].mxu0
        %v2178 = vadd.f32 0.0, %v2177
        %v2179 = vpop.f32.mrb[0].mxu0
        %2180 = vmatprep.mubr.f32.mxu0 0.0
        %2181 = vmatmul.mubr.f32.gmra.mrb[0].mxu0 %v1999
        %v2182 = vpop.f32.mrb[0].mxu0
        %v2183 = vadd.f32 0.0, %v2182
        %v2184 = vpop.f32.mrb[0].mxu0
        %2185 = vmatprep.mubr.f32.mxu0 0.0
        %2186 = vmatmul.mubr.f32.gmra.mrb[0].mxu0 %v2002
        %v2187 = vpop.f32.mrb[0].mxu0
        %v2188 = vadd.f32 0.0, %v2187
        %v2189 = vpop.f32.mrb[0].mxu0
        %2190 = vmatprep.mubr.f32.mxu0 0.0
        %2191 = vmatmul.mubr.f32.gmra.mrb[0].mxu0 %v2005
        %v2192 = vpop.f32.mrb[0].mxu0
        %v2193 = vadd.f32 0.0, %v2192
        %v2194 = vpop.f32.mrb[0].mxu0
        %2195 = vmatprep.mubr.f32.mxu0 0.0
        %2196 = vmatmul.mubr.f32.gmra.mrb[0].mxu0 %v2008
        %v2197 = vpop.f32.mrb[0].mxu0
        %v2198 = vadd.f32 0.0, %v2197
        %v2199 = vpop.f32.mrb[0].mxu0
        %2200 = vmatprep.mubr.f32.mxu0 0.0
        %2201 = vmatmul.mubr.f32.gmra.mrb[0].mxu0 %v2011
        %v2202 = vpop.f32.mrb[0].mxu0
        %v2203 = vadd.f32 0.0, %v2202
        %v2204 = vpop.f32.mrb[0].mxu0
        %2205 = vmatprep.mubr.f32.mxu0 0.0
        %2206 = vmatmul.mubr.f32.gmra.mrb[0].mxu0 %v2014
        %v2207 = vpop.f32.mrb[0].mxu0
        %v2208 = vadd.f32 0.0, %v2207
        %v2209 = vpop.f32.mrb[0].mxu0
        %2210 = vmatprep.mubr.f32.mxu0 0.0
        %2211 = vmatmul.mubr.f32.gmra.mrb[0].mxu0 %v2017
        %v2212 = vpop.f32.mrb[0].mxu0
        %v2213 = vadd.f32 0.0, %v2212
        %v2214 = vpop.f32.mrb[0].mxu0
        %2215 = vmatprep.mubr.f32.mxu0 0.0
        %2216 = vmatmul.mubr.f32.gmra.mrb[0].mxu0 %v2020
        %v2217 = vpop.f32.mrb[0].mxu0
        %v2218 = vadd.f32 0.0, %v2217
        %v2219 = vpop.f32.mrb[0].mxu0
        %2220 = vmatprep.mubr.f32.mxu0 0.0
        %2221 = vmatmul.mubr.f32.gmra.mrb[0].mxu0 %v2023
        %v2222 = vpop.f32.mrb[0].mxu0
        %v2223 = vadd.f32 0.0, %v2222
        %v2224 = vpop.f32.mrb[0].mxu0
        %2225 = vmatprep.mubr.f32.mxu0 0.0
        %2226 = vmatmul.mubr.f32.gmra.mrb[0].mxu0 %v2026
        %v2227 = vpop.f32.mrb[0].mxu0
        %v2228 = vadd.f32 0.0, %v2227
        %v2229 = vpop.f32.mrb[0].mxu0
        %2230 = vmatprep.mubr.f32.mxu0 0.0
        %2231 = vmatmul.mubr.f32.gmra.mrb[0].mxu0 %v2029
        %v2232 = vpop.f32.mrb[0].mxu0
        %v2233 = vadd.f32 0.0, %v2232
        %v2234 = vpop.f32.mrb[0].mxu0
        %2235 = vmatprep.mubr.f32.mxu0 0.0
        %2236 = vmatmul.mubr.f32.gmra.mrb[0].mxu0 %v2032
        %v2237 = vpop.f32.mrb[0].mxu0
        %v2238 = vadd.f32 0.0, %v2237
        %v2239 = vpop.f32.mrb[0].mxu0
        %2240 = vmatprep.mubr.f32.mxu0 0.0
        %2241 = vmatmul.mubr.f32.gmra.mrb[0].mxu0 %v2035
        %v2242 = vpop.f32.mrb[0].mxu0
        %v2243 = vadd.f32 0.0, %v2242
        %v2244 = vpop.f32.mrb[0].mxu0
        %2245 = vmatprep.mubr.f32.mxu0 0.0
        %2246 = vmatmul.mubr.f32.gmra.mrb[0].mxu0 %v2038
        %v2247 = vpop.f32.mrb[0].mxu0
        %v2248 = vadd.f32 0.0, %v2247
        %v2249 = vpop.f32.mrb[0].mxu0
        %2250 = vmatprep.mubr.f32.mxu0 0.0
        %2251 = vmatmul.mubr.f32.gmra.mrb[0].mxu0 %v2041
        %v2252 = vpop.f32.mrb[0].mxu0
        %v2253 = vadd.f32 0.0, %v2252
        %v2254 = vpop.f32.mrb[0].mxu0
        %2255 = vmatprep.mubr.f32.mxu0 0.0
        %2256 = vmatmul.mubr.f32.gmra.mrb[0].mxu0 %v2044
        %v2257 = vpop.f32.mrb[0].mxu0
        %v2258 = vadd.f32 0.0, %v2257
        %v2259 = vpop.f32.mrb[0].mxu0
        %2260 = vmatprep.mubr.f32.mxu0 0.0
        %2261 = vmatmul.mubr.f32.gmra.mrb[0].mxu0 %v2047
        %v2262 = vpop.f32.mrb[0].mxu0
        %v2263 = vadd.f32 0.0, %v2262
        %v2264 = vpop.f32.mrb[0].mxu0
        %2265 = vmatprep.mubr.f32.mxu0 0.0
        %2266 = vmatmul.mubr.f32.gmra.mrb[0].mxu0 %v2050
        %v2267 = vpop.f32.mrb[0].mxu0
        %v2268 = vadd.f32 0.0, %v2267
        %v2269 = vpop.f32.mrb[0].mxu0
        %2270 = vmatprep.mubr.f32.mxu0 0.0
        %2271 = vmatmul.mubr.f32.gmra.mrb[0].mxu0 %v2053
        %v2272 = vpop.f32.mrb[0].mxu0
        %v2273 = vadd.f32 0.0, %v2272
        %v2274 = vpop.f32.mrb[0].mxu0
        %2275 = vmatprep.mubr.f32.mxu0 0.0
        %2276 = vmatmul.mubr.f32.gmra.mrb[0].mxu0 %v2056
        %v2277 = vpop.f32.mrb[0].mxu0
        %v2278 = vadd.f32 0.0, %v2277
        %v2279 = vpop.f32.mrb[0].mxu0
        %2280 = vmatprep.mubr.f32.mxu0 0.0
        %2281 = vmatmul.mubr.f32.gmra.mrb[0].mxu0 %v2059
        %v2282 = vpop.f32.mrb[0].mxu0
        %v2283 = vadd.f32 0.0, %v2282
        %v2284 = vpop.f32.mrb[0].mxu0
        %2285 = vmatprep.mubr.f32.mxu0 0.0
        %2286 = vmatmul.mubr.f32.gmra.mrb[0].mxu0 %v2062
        %v2287 = vpop.f32.mrb[0].mxu0
        %v2288 = vadd.f32 0.0, %v2287
        %v2289 = vpop.f32.mrb[0].mxu0
        %2290 = vmatprep.mubr.f32.mxu0 0.0
        %2291 = vmatmul.mubr.f32.gmra.mrb[0].mxu0 %v2065
        %v2292 = vpop.f32.mrb[0].mxu0
        %v2293 = vadd.f32 0.0, %v2292
        %v2294 = vpop.f32.mrb[0].mxu0
        %2295 = vdwg.mxu0
        %2296 = vst.msk [vmem:[%s216] sm:$0xff] %vm249, %v2138
        %2297 = vst.msk [vmem:[%s216 + $0x8] sm:$0xff] %vm249, %v2143
        %2298 = vst.msk [vmem:[%s216 + $0x10] sm:$0xff] %vm249, %v2148
        %2299 = vst.msk [vmem:[%s216 + $0x18] sm:$0xff] %vm249, %v2153
        %2300 = vst.msk [vmem:[%s216 + $0x20] sm:$0xff] %vm249, %v2158
        %2301 = vst.msk [vmem:[%s216 + $0x28] sm:$0xff] %vm249, %v2163
        %2302 = vst.msk [vmem:[%s216 + $0x30] sm:$0xff] %vm249, %v2168
        %2303 = vst.msk [vmem:[%s216 + $0x38] sm:$0xff] %vm249, %v2173
        %2304 = vst.msk [vmem:[%s216 + $0x40] sm:$0xff] %vm249, %v2178
        %2305 = vst.msk [vmem:[%s216 + $0x48] sm:$0xff] %vm249, %v2183
        %2306 = vst.msk [vmem:[%s216 + $0x50] sm:$0xff] %vm249, %v2188
        %2307 = vst.msk [vmem:[%s216 + $0x58] sm:$0xff] %vm249, %v2193
        %2308 = vst.msk [vmem:[%s216 + $0x60] sm:$0xff] %vm249, %v2198
        %2309 = vst.msk [vmem:[%s216 + $0x68] sm:$0xff] %vm249, %v2203
        %2310 = vst.msk [vmem:[%s216 + $0x70] sm:$0xff] %vm249, %v2208
        %2311 = vst.msk [vmem:[%s216 + $0x78] sm:$0xff] %vm249, %v2213
        %2312 = vst.msk [vmem:[%s216 + $0x80] sm:$0xff] %vm249, %v2218
        %2313 = vst.msk [vmem:[%s216 + $0x88] sm:$0xff] %vm249, %v2223
        %2314 = vst.msk [vmem:[%s216 + $0x90] sm:$0xff] %vm249, %v2228
        %2315 = vst.msk [vmem:[%s216 + $0x98] sm:$0xff] %vm249, %v2233
        %2316 = vst.msk [vmem:[%s216 + $0xa0] sm:$0xff] %vm249, %v2238
        %2317 = vst.msk [vmem:[%s216 + $0xa8] sm:$0xff] %vm249, %v2243
        %2318 = vst.msk [vmem:[%s216 + $0xb0] sm:$0xff] %vm249, %v2248
        %2319 = vst.msk [vmem:[%s216 + $0xb8] sm:$0xff] %vm249, %v2253
        %2320 = vst.msk [vmem:[%s216 + $0xc0] sm:$0xff] %vm249, %v2258
        %2321 = vst.msk [vmem:[%s216 + $0xc8] sm:$0xff] %vm249, %v2263
        %2322 = vst.msk [vmem:[%s216 + $0xd0] sm:$0xff] %vm249, %v2268
        %2323 = vst.msk [vmem:[%s216 + $0xd8] sm:$0xff] %vm249, %v2273
        %2324 = vst.msk [vmem:[%s216 + $0xe0] sm:$0xff] %vm249, %v2278
        %2325 = vst.msk [vmem:[%s216 + $0xe8] sm:$0xff] %vm249, %v2283
        %2326 = vst.msk [vmem:[%s216 + $0xf0] sm:$0xff] %vm249, %v2288
        %2327 = vst.msk [vmem:[%s216 + $0xf8] sm:$0xff] %vm249, %v2293
        %v2328 = vsel %vm249, %v2138, 0.0
        %v2329 = vsel %vm249, %v2143, 0.0
        %v2330 = vadd.f32 %v2328, %v2329
        %v2331 = vsel %vm249, %v2148, 0.0
        %v2332 = vadd.f32 %v2330, %v2331
        %v2333 = vsel %vm249, %v2153, 0.0
        %v2334 = vadd.f32 %v2332, %v2333
        %v2335 = vsel %vm249, %v2158, 0.0
        %v2336 = vadd.f32 %v2334, %v2335
        %v2337 = vsel %vm249, %v2163, 0.0
        %v2338 = vadd.f32 %v2336, %v2337
        %v2339 = vsel %vm249, %v2168, 0.0
        %v2340 = vadd.f32 %v2338, %v2339
        %v2341 = vsel %vm249, %v2173, 0.0
        %v2342 = vadd.f32 %v2340, %v2341
        %v2343 = vsel %vm249, %v2178, 0.0
        %v2344 = vadd.f32 %v2342, %v2343
        %v2345 = vsel %vm249, %v2183, 0.0
        %v2346 = vadd.f32 %v2344, %v2345
        %v2347 = vsel %vm249, %v2188, 0.0
        %v2348 = vadd.f32 %v2346, %v2347
        %v2349 = vsel %vm249, %v2193, 0.0
        %v2350 = vadd.f32 %v2348, %v2349
        %v2351 = vsel %vm249, %v2198, 0.0
        %v2352 = vadd.f32 %v2350, %v2351
        %v2353 = vsel %vm249, %v2203, 0.0
        %v2354 = vadd.f32 %v2352, %v2353
        %v2355 = vsel %vm249, %v2208, 0.0
        %v2356 = vadd.f32 %v2354, %v2355
        %v2357 = vsel %vm249, %v2213, 0.0
        %v2358 = vadd.f32 %v2356, %v2357
        %v2359 = vsel %vm249, %v2218, 0.0
        %v2360 = vadd.f32 %v2358, %v2359
        %v2361 = vsel %vm249, %v2223, 0.0
        %v2362 = vadd.f32 %v2360, %v2361
        %v2363 = vsel %vm249, %v2228, 0.0
        %v2364 = vadd.f32 %v2362, %v2363
        %v2365 = vsel %vm249, %v2233, 0.0
        %v2366 = vadd.f32 %v2364, %v2365
        %v2367 = vsel %vm249, %v2238, 0.0
        %v2368 = vadd.f32 %v2366, %v2367
        %v2369 = vsel %vm249, %v2243, 0.0
        %v2370 = vadd.f32 %v2368, %v2369
        %v2371 = vsel %vm249, %v2248, 0.0
        %v2372 = vadd.f32 %v2370, %v2371
        %v2373 = vsel %vm249, %v2253, 0.0
        %v2374 = vadd.f32 %v2372, %v2373
        %v2375 = vsel %vm249, %v2258, 0.0
        %v2376 = vadd.f32 %v2374, %v2375
        %v2377 = vsel %vm249, %v2263, 0.0
        %v2378 = vadd.f32 %v2376, %v2377
        %v2379 = vsel %vm249, %v2268, 0.0
        %v2380 = vadd.f32 %v2378, %v2379
        %v2381 = vsel %vm249, %v2273, 0.0
        %v2382 = vadd.f32 %v2380, %v2381
        %v2383 = vsel %vm249, %v2278, 0.0
        %v2384 = vadd.f32 %v2382, %v2383
        %v2385 = vsel %vm249, %v2283, 0.0
        %v2386 = vadd.f32 %v2384, %v2385
        %v2387 = vsel %vm249, %v2288, 0.0
        %v2388 = vadd.f32 %v2386, %v2387
        %v2389 = vsel %vm249, %v2293, 0.0
        %v2390 = vadd.f32 %v2388, %v2389
        %v2391 = vrot.slane %v2390, 4
        %v2392 = vadd.f32 %v2390, %v2391
        %v2393 = vrot.slane %v2392, 2
        %v2394 = vadd.f32 %v2392, %v2393
        %v2395 = vrot.slane %v2394, 1
        %v2396 = vadd.f32 %v2394, %v2395
        %2397 = vst.msk [vmem:[%s200] sm:$0x1] %vm259, %v2396
        %v2398 = vmul.f32 %v2138, %v2138
        %v2399 = vmul.f32 %v2143, %v2143
        %v2400 = vmul.f32 %v2148, %v2148
        %v2401 = vmul.f32 %v2153, %v2153
        %v2402 = vmul.f32 %v2158, %v2158
        %v2403 = vmul.f32 %v2163, %v2163
        %v2404 = vmul.f32 %v2168, %v2168
        %v2405 = vmul.f32 %v2173, %v2173
        %v2406 = vmul.f32 %v2178, %v2178
        %v2407 = vmul.f32 %v2183, %v2183
        %v2408 = vmul.f32 %v2188, %v2188
        %v2409 = vmul.f32 %v2193, %v2193
        %v2410 = vmul.f32 %v2198, %v2198
        %v2411 = vmul.f32 %v2203, %v2203
        %v2412 = vmul.f32 %v2208, %v2208
        %v2413 = vmul.f32 %v2213, %v2213
        %v2414 = vmul.f32 %v2218, %v2218
        %v2415 = vmul.f32 %v2223, %v2223
        %v2416 = vmul.f32 %v2228, %v2228
        %v2417 = vmul.f32 %v2233, %v2233
        %v2418 = vmul.f32 %v2238, %v2238
        %v2419 = vmul.f32 %v2243, %v2243
        %v2420 = vmul.f32 %v2248, %v2248
        %v2421 = vmul.f32 %v2253, %v2253
        %v2422 = vmul.f32 %v2258, %v2258
        %v2423 = vmul.f32 %v2263, %v2263
        %v2424 = vmul.f32 %v2268, %v2268
        %v2425 = vmul.f32 %v2273, %v2273
        %v2426 = vmul.f32 %v2278, %v2278
        %v2427 = vmul.f32 %v2283, %v2283
        %v2428 = vmul.f32 %v2288, %v2288
        %v2429 = vmul.f32 %v2293, %v2293
        %v2430 = vsel %vm249, %v2398, 0.0
        %v2431 = vsel %vm249, %v2399, 0.0
        %v2432 = vadd.f32 %v2430, %v2431
        %v2433 = vsel %vm249, %v2400, 0.0
        %v2434 = vadd.f32 %v2432, %v2433
        %v2435 = vsel %vm249, %v2401, 0.0
        %v2436 = vadd.f32 %v2434, %v2435
        %v2437 = vsel %vm249, %v2402, 0.0
        %v2438 = vadd.f32 %v2436, %v2437
        %v2439 = vsel %vm249, %v2403, 0.0
        %v2440 = vadd.f32 %v2438, %v2439
        %v2441 = vsel %vm249, %v2404, 0.0
        %v2442 = vadd.f32 %v2440, %v2441
        %v2443 = vsel %vm249, %v2405, 0.0
        %v2444 = vadd.f32 %v2442, %v2443
        %v2445 = vsel %vm249, %v2406, 0.0
        %v2446 = vadd.f32 %v2444, %v2445
        %v2447 = vsel %vm249, %v2407, 0.0
        %v2448 = vadd.f32 %v2446, %v2447
        %v2449 = vsel %vm249, %v2408, 0.0
        %v2450 = vadd.f32 %v2448, %v2449
        %v2451 = vsel %vm249, %v2409, 0.0
        %v2452 = vadd.f32 %v2450, %v2451
        %v2453 = vsel %vm249, %v2410, 0.0
        %v2454 = vadd.f32 %v2452, %v2453
        %v2455 = vsel %vm249, %v2411, 0.0
        %v2456 = vadd.f32 %v2454, %v2455
        %v2457 = vsel %vm249, %v2412, 0.0
        %v2458 = vadd.f32 %v2456, %v2457
        %v2459 = vsel %vm249, %v2413, 0.0
        %v2460 = vadd.f32 %v2458, %v2459
        %v2461 = vsel %vm249, %v2414, 0.0
        %v2462 = vadd.f32 %v2460, %v2461
        %v2463 = vsel %vm249, %v2415, 0.0
        %v2464 = vadd.f32 %v2462, %v2463
        %v2465 = vsel %vm249, %v2416, 0.0
        %v2466 = vadd.f32 %v2464, %v2465
        %v2467 = vsel %vm249, %v2417, 0.0
        %v2468 = vadd.f32 %v2466, %v2467
        %v2469 = vsel %vm249, %v2418, 0.0
        %v2470 = vadd.f32 %v2468, %v2469
        %v2471 = vsel %vm249, %v2419, 0.0
        %v2472 = vadd.f32 %v2470, %v2471
        %v2473 = vsel %vm249, %v2420, 0.0
        %v2474 = vadd.f32 %v2472, %v2473
        %v2475 = vsel %vm249, %v2421, 0.0
        %v2476 = vadd.f32 %v2474, %v2475
        %v2477 = vsel %vm249, %v2422, 0.0
        %v2478 = vadd.f32 %v2476, %v2477
        %v2479 = vsel %vm249, %v2423, 0.0
        %v2480 = vadd.f32 %v2478, %v2479
        %v2481 = vsel %vm249, %v2424, 0.0
        %v2482 = vadd.f32 %v2480, %v2481
        %v2483 = vsel %vm249, %v2425, 0.0
        %v2484 = vadd.f32 %v2482, %v2483
        %v2485 = vsel %vm249, %v2426, 0.0
        %v2486 = vadd.f32 %v2484, %v2485
        %v2487 = vsel %vm249, %v2427, 0.0
        %v2488 = vadd.f32 %v2486, %v2487
        %v2489 = vsel %vm249, %v2428, 0.0
        %v2490 = vadd.f32 %v2488, %v2489
        %v2491 = vsel %vm249, %v2429, 0.0
        %v2492 = vadd.f32 %v2490, %v2491
        %v2493 = vrot.slane %v2492, 4
        %v2494 = vadd.f32 %v2492, %v2493
        %v2495 = vrot.slane %v2494, 2
        %v2496 = vadd.f32 %v2494, %v2495
        %v2497 = vrot.slane %v2496, 1
        %v2498 = vadd.f32 %v2496, %v2497
        %2499 = vst.msk [vmem:[%s206] sm:$0x1] %vm259, %v2498
        %p2500 = scmp.lt.s32.totalorder %s22, 1
        %s2501 = scalar_select %p2500, %s22, 1
        %s2502 = smul.addr %s2501, 32
        %s2503 = smul.addr %s2502, 8
        %s2504 = scalar_lea.vmem %s2, %s2503
        %s2505 = sand.u32 %s103, 1
        %s2506 = scalar_lea.sflag [#allocation5], %s2505
        %s2507 = sand.u32 %s103, 1
        %s2508 = scalar_lea.vmem [#allocation4], %s2507
        %s2509 = sand.u32 %s129, 1
        %s2510 = scalar_lea.sflag [#allocation7], %s2509
        %s2511 = sand.u32 %s129, 1
        %s2512 = scalar_lea.vmem [#allocation6], %s2511
        // Predicated region
        $region29: #{tpu_custom_call.1} parent=27 // pred_check
          %p2513 = pneg %p87
        $region30: #{tpu_custom_call.1} parent=27 // pred_check_branch
          %2515 = sbr.rel (%p2513) target = $region32
        $region31: #{tpu_custom_call.1} parent=27 // pred_region
          _
        $region32: #{tpu_custom_call.1} parent=27 // pred_fallthru
          _
        // Predicated region
        $region33: #{tpu_custom_call.1} parent=27 // pred_check
          %p2516 = pneg %p113
        $region34: #{tpu_custom_call.1} parent=27 // pred_check_branch
          %2518 = sbr.rel (%p2516) target = $region36
        $region35: #{tpu_custom_call.1} parent=27 // pred_region
          %s2520 = ssub.s32 16, 16
          %2521 = vsyncadd %s2506, %s2520
          %s2522 = smul.addr %s22, 16
          %s2523 = scalar_lea.hbm %s3, %s2522
          %s2525 = sshll.u32 %s2508, 4
          %s2526 = int_to_ptr.vmem [resolvable:$true] %s2525
          %2528 = dma.vmem_to_hbm [thread:$0]  %s2526, 16, %s2523, %s2506
        $region36: #{tpu_custom_call.1} parent=27 // pred_fallthru
          _
        // Predicated region
        $region37: #{tpu_custom_call.1} parent=27 // pred_check
          %p2529 = pneg %p139
        $region38: #{tpu_custom_call.1} parent=27 // pred_check_branch
          %2531 = sbr.rel (%p2529) target = $region40
        $region39: #{tpu_custom_call.1} parent=27 // pred_region
          %s2533 = ssub.s32 16, 16
          %2534 = vsyncadd %s2510, %s2533
          %s2535 = smul.addr %s22, 16
          %s2536 = scalar_lea.hbm %s4, %s2535
          %s2538 = sshll.u32 %s2512, 4
          %s2539 = int_to_ptr.vmem [resolvable:$true] %s2538
          %2541 = dma.vmem_to_hbm [thread:$0]  %s2539, 16, %s2536, %s2510
        $region40: #{tpu_custom_call.1} parent=27 // pred_fallthru
          _
      $region28: #{tpu_custom_call.1} parent=5 // pred_fallthru
        _
      %p2542 = scmp.le.s32.totalorder 2, %s17
      // Predicated region
      $region41: #{tpu_custom_call.1} parent=5 // pred_check
        %p2543 = pneg %p2542
      $region42: #{tpu_custom_call.1} parent=5 // pred_check_branch
        %2545 = sbr.rel (%p2543) target = $region44
      $region43: #{tpu_custom_call.1} parent=5 // pred_region
        %s2546 = ssub.s32 %s17, 2
        // Predicated region
        $region45: #{tpu_custom_call.1} parent=43 // pred_check
          %p2547 = pneg %p93
        $region46: #{tpu_custom_call.1} parent=43 // pred_check_branch
          %2549 = sbr.rel (%p2547) target = $region48
        $region47: #{tpu_custom_call.1} parent=43 // pred_region
          %p2550 = scmp.lt.s32.totalorder %s23, 1
          %s2551 = scalar_select %p2550, %s23, 1
          %s2552 = smul.addr %s2551, 32
          %s2553 = smul.addr %s2552, 8
          %s2554 = scalar_lea.vmem %s2, %s2553
        $region48: #{tpu_custom_call.1} parent=43 // pred_fallthru
          _
        // Predicated region
        $region49: #{tpu_custom_call.1} parent=43 // pred_check
          %p2555 = pneg %p119
        $region50: #{tpu_custom_call.1} parent=43 // pred_check_branch
          %2557 = sbr.rel (%p2555) target = $region52
        $region51: #{tpu_custom_call.1} parent=43 // pred_region
          %s2558 = sand.u32 %s104, 1
          %s2559 = scalar_lea.sflag [#allocation5], %s2558
          %s2560 = sand.u32 %s104, 1
          %s2561 = scalar_lea.vmem [#allocation4], %s2560
          %2562 = dma.done %s2559, 16
        $region52: #{tpu_custom_call.1} parent=43 // pred_fallthru
          _
        // Predicated region
        $region53: #{tpu_custom_call.1} parent=43 // pred_check
          %p2563 = pneg %p145
        $region54: #{tpu_custom_call.1} parent=43 // pred_check_branch
          %2565 = sbr.rel (%p2563) target = $region56
        $region55: #{tpu_custom_call.1} parent=43 // pred_region
          %s2566 = sand.u32 %s130, 1
          %s2567 = scalar_lea.sflag [#allocation7], %s2566
          %s2568 = sand.u32 %s130, 1
          %s2569 = scalar_lea.vmem [#allocation6], %s2568
          %2570 = dma.done %s2567, 16
        $region56: #{tpu_custom_call.1} parent=43 // pred_fallthru
          _
      $region44: #{tpu_custom_call.1} parent=5 // pred_fallthru
        _
    $region6: #{tpu_custom_call.1} parent=1 // loop_footer
      %s21 = sadd.s32 1, %s17
    $region7: #{tpu_custom_call.1} parent=1 // loop_footer_branch
      %16 = sbr.rel target = $region3
    $region8: #{tpu_custom_call.1} parent=1 // loop_exit
      _
    %2571 = vsyncpa [#allocation5], 1
    %s2572 = scalar_lea.sflag [#allocation5], 1
    %2573 = vsyncpa %s2572, 1
    %2574 = vsyncpa [#allocation7], 1
    %s2575 = scalar_lea.sflag [#allocation7], 1
    %2576 = vsyncpa %s2575, 1

</llo_original>
